<compile_context>
chip_gen: v6e
topology: v6e:2x2x1
jax: 0.10.0
libtpu: 0.0.40
codegen_flags: <defaults>
</compile_context>

<pallas_src>
import math

import jax
import jax.numpy as jnp
import numpy as np
from jax.experimental import pallas as pl
from jax.experimental.pallas import tpu as pltpu


def _unique_shifts(wave_layers, k):
    """All distinct nonzero tap shifts used by any layer of any block."""
    center = (k - 1) // 2
    shifts = {(t - center) * (2 ** l)
              for nl in wave_layers for l in range(nl) for t in range(k)}
    shifts.discard(0)
    return sorted(shifts)


# ----------------------------------------------------------------------------
# Pallas kernel: one wave block per grid step, whole lane-packed batch.
# ----------------------------------------------------------------------------
def make_wavenet_kernel(wave_layers, k, c_out, n):
    max_nl = max(wave_layers)
    shifts = _unique_shifts(wave_layers, k)
    shift_idx = {s: i for i, s in enumerate(shifts)}
    center = (k - 1) // 2
    bf16 = jnp.bfloat16

    def kernel(nl_ref, x_ref, wi_ref, wfg_ref, w1_ref, mask_ref, o_ref, h_scr):
        b = pl.program_id(0)
        nl_b = nl_ref[b]                                   # SMEM scalar: layers in block b
        ones_row = jnp.ones((1, n), bf16)                  # bias row for folded biases

        # init 1x1 conv, bias folded into the last weight column (x already has ones row)
        h0 = jnp.dot(wi_ref[0], x_ref[0], preferred_element_type=jnp.float32)
        h_scr[...] = h0
        o_ref[0] = h0                                      # residual accumulates in out block

        for l in range(max_nl):
            @pl.when(l < nl_b)                             # skip padded (dead) layers
            def _(l=l):
                dil = 2 ** l
                hb = h_scr[...].astype(bf16)               # cast once; taps built in bf16
                taps = []
                for t in range(k):
                    s = (t - center) * dil
                    if s == 0:
                        taps.append(hb)
                    else:
                        rolled = jnp.roll(hb, -s, axis=-1)
                        m = mask_ref[shift_idx[s]] != 0.0  # 'same' zero-pad + batch boundary
                        taps.append(jnp.where(m, rolled, jnp.zeros_like(rolled)))
                stack = jnp.concatenate(taps + [ones_row], axis=0)   # (k*C+1, B*L) bf16
                # fused filter+gate dilated conv: one (2C, kC+1) @ (kC+1, B*L), f32 acc
                fg = jnp.dot(wfg_ref[0, l], stack, preferred_element_type=jnp.float32)
                z = jnp.tanh(fg[:c_out]) * jax.nn.sigmoid(fg[c_out:])
                zb = jnp.concatenate([z.astype(bf16), ones_row], axis=0)   # (C+1, B*L)
                h_new = jnp.dot(w1_ref[0, l], zb, preferred_element_type=jnp.float32)
                h_scr[...] = h_new
                o_ref[0] = o_ref[0] + h_new
        # lane-dense store: last dim = B*L (128 at the demo shape) -> unmasked vst

    return kernel


# ----------------------------------------------------------------------------
# Full module forward: pack, one pallas_call (grid over blocks), unpack + pool in XLA.
# ----------------------------------------------------------------------------
def wavenet_spectrogram(x, params, wave_layers, kernel_size, downsample,
                        sigmoid=False, output_size=None, separate_channel=False):
    """x: (B, C_in, L) -> (B, len(wave_layers), base_filters, L // downsample)."""
    bsz, c_in, length = x.shape
    num_blocks = len(wave_layers)
    max_nl = max(wave_layers)
    total_layers = int(sum(wave_layers))
    c_out = params[0]["wi"].shape[0]
    c_in_w = params[0]["wi"].shape[1]          # 1 if separate_channel params, else c_in
    c_in_aug = c_in_w + 1                      # + folded-bias ones row
    k = kernel_size
    assert length % downsample == 0
    n = bsz * length
    l_out = length // downsample
    bf16 = jnp.bfloat16

    # ---- pack input: batch folded into the lane axis, plus a ones row (bias fold) ----
    if separate_channel:
        xp = jnp.transpose(x[:, :num_blocks, :], (1, 0, 2)).reshape(num_blocks, 1, n)
    else:
        xp = jnp.transpose(x, (1, 0, 2)).reshape(1, c_in, n)
    x_packed = jnp.concatenate([xp, jnp.ones((xp.shape[0], 1, n), xp.dtype)],
                               axis=1).astype(bf16)

    # ---- fuse weights: filter+gate branches, the k taps, and the bias column ----------
    def fuse_block(p, nl):
        # (nl, k, O, I) -> (nl, O, k*I); column index = tap*c_out + input_channel.
        wf = jnp.transpose(p["wf"], (0, 2, 1, 3)).reshape(nl, c_out, k * c_out)
        wg = jnp.transpose(p["wg"], (0, 2, 1, 3)).reshape(nl, c_out, k * c_out)
        wfg = jnp.concatenate([wf, wg], axis=1)                        # (nl, 2C, kC)
        bfg = jnp.concatenate([p["bf"], p["bg"]], axis=1)              # (nl, 2C, 1)
        wfg = jnp.concatenate([wfg, bfg], axis=2)                      # bias column
        w1 = jnp.concatenate([p["w1"], p["b1"]], axis=2)               # (nl, C, C+1)
        pad = max_nl - nl
        if pad:
            wfg = jnp.pad(wfg, ((0, pad), (0, 0), (0, 0)))
            w1 = jnp.pad(w1, ((0, pad), (0, 0), (0, 0)))
        return wfg, w1

    wi_all = jnp.stack([jnp.concatenate([p["wi"], p["bi"]], axis=1)
                        for p in params]).astype(bf16)                 # (nb, C, c_in_aug)
    fused = [fuse_block(p, nl) for p, nl in zip(params, wave_layers)]
    wfg_all = jnp.stack([f[0] for f in fused]).astype(bf16)            # (nb, max_nl, 2C, kC+1)
    w1_all = jnp.stack([f[1] for f in fused]).astype(bf16)             # (nb, max_nl, C, C+1)

    # ---- precomputed 0/1 shift masks (tiny constants, hoisted out of the kernel) ------
    shifts = _unique_shifts(wave_layers, k)
    pos = np.tile(np.arange(length), bsz)
    if shifts:
        masks = np.stack([((pos >= -s) & (pos < length - s)).astype(np.float32)
                          for s in shifts])[:, None, :]                # (n_shift, 1, B*L)
    else:
        masks = np.ones((1, 1, n), np.float32)
    masks = jnp.asarray(masks)

    nl_arr = jnp.asarray(wave_layers, dtype=jnp.int32)                 # scalar prefetch

    # ---- one pallas_call, grid over (independent) wave blocks -------------------------
    kernel = make_wavenet_kernel(tuple(wave_layers), k, c_out, n)

    flops = 0
    for nl in wave_layers:
        flops += 2 * c_out * c_in_aug * n                              # init 1x1 (+bias)
        flops += nl * (2 * (2 * c_out) * (k * c_out + 1) * n           # fused gate conv
                       + 2 * c_out * (c_out + 1) * n)                  # 1x1 (+bias)
    cost = pl.CostEstimate(
        flops=flops,
        transcendentals=2 * total_layers * c_out * n,
        bytes_accessed=(2 * (x_packed.size + wi_all.size + wfg_all.size + w1_all.size)
                        + 4 * masks.size + 4 * num_blocks * c_out * n))

    x_blk_idx = (lambda b, nl: (b, 0, 0)) if separate_channel else (lambda b, nl: (0, 0, 0))

    grid_spec = pltpu.PrefetchScalarGridSpec(
        num_scalar_prefetch=1,
        grid=(num_blocks,),
        in_specs=[
            pl.BlockSpec((1, c_in_aug, n), x_blk_idx),
            pl.BlockSpec((1, c_out, c_in_aug), lambda b, nl: (b, 0, 0)),
            pl.BlockSpec((1, max_nl, 2 * c_out, k * c_out + 1), lambda b, nl: (b, 0, 0, 0)),
            pl.BlockSpec((1, max_nl, c_out, c_out + 1), lambda b, nl: (b, 0, 0, 0)),
            pl.BlockSpec(masks.shape, lambda b, nl: (0, 0, 0)),
        ],
        out_specs=pl.BlockSpec((1, c_out, n), lambda b, nl: (b, 0, 0)),
        scratch_shapes=[pltpu.VMEM((c_out, n), jnp.float32)],          # h carrier
    )

    res_all = pl.pallas_call(
        kernel,
        grid_spec=grid_spec,
        out_shape=jax.ShapeDtypeStruct((num_blocks, c_out, n), jnp.float32),
        compiler_params=pltpu.CompilerParams(
            dimension_semantics=("parallel",),          # blocks shard across v7x's 2 TCs
            vmem_limit_bytes=32 * 1024 * 1024),
        cost_estimate=cost,
    )(nl_arr, x_packed, wi_all, wfg_all, w1_all, masks)

    # ---- unpack + AvgPool1d(downsample) as reshape+mean (no O(L^2) pool matrix) -------
    out = res_all.reshape(num_blocks, c_out, bsz, length).transpose(2, 0, 1, 3)
    out = out.reshape(bsz, num_blocks, c_out, l_out, downsample).mean(-1)

    if output_size is not None:
        l_cur = out.shape[-1]
        # AdaptiveAvgPool2d((None, output_size)) -- divisible-window case only.
        # TODO(synk): non-divisible adaptive pooling windows are not implemented.
        assert l_cur % output_size == 0
        out = out.reshape(*out.shape[:-1], output_size, l_cur // output_size).mean(-1)
    if sigmoid:
        out = jax.nn.sigmoid(out)
    return out


# ----------------------------------------------------------------------------
# Deterministic parameter init (kaiming-normal conv weights, small uniform biases).
# ----------------------------------------------------------------------------
def init_wave_block_params(key, num_layers, c_in, c_out, k):
    ks = jax.random.split(key, 8)

    def kaiming(kk, shape, fan_in):
        return jax.random.normal(kk, shape, jnp.float32) * math.sqrt(2.0 / fan_in)

    def bias(kk, shape):
        return jax.random.uniform(kk, shape, jnp.float32, -0.1, 0.1)

    return dict(
        wi=kaiming(ks[0], (c_out, c_in), c_in),
        bi=bias(ks[1], (c_out, 1)),
        wf=kaiming(ks[2], (num_layers, k, c_out, c_out), c_out * k),
        bf=bias(ks[3], (num_layers, c_out, 1)),
        wg=kaiming(ks[4], (num_layers, k, c_out, c_out), c_out * k),
        bg=bias(ks[5], (num_layers, c_out, 1)),
        w1=kaiming(ks[6], (num_layers, c_out, c_out), c_out),
        b1=bias(ks[7], (num_layers, c_out, 1)),
    )


def init_wavenet_spectrogram(key, c_in, base_filters, wave_layers, k):
    keys = jax.random.split(key, len(wave_layers))
    return [init_wave_block_params(keys[i], wave_layers[i], c_in, base_filters, k)
            for i in range(len(wave_layers))]


# ----------------------------------------------------------------------------
# Pure-JAX reference.  Mirrors the kernel's precision choices: bf16 MXU operands with f32
# accumulation, element-wise math in f32, and biases stored in bf16 (the kernel folds them
# into bf16 weight columns).
# ----------------------------------------------------------------------------
def _wave_block_ref(x, p, num_layers, k, ds):
    bf16, f32 = jnp.bfloat16, jnp.float32

    def b_(v):                      # bias as the kernel sees it (bf16 weight column)
        return v.astype(bf16).astype(f32)

    def dot11(w, a):                # 1x1 conv: (O, I) x (B, I, L) -> (B, O, L)
        return jnp.einsum("oi,bil->bol", w.astype(bf16), a.astype(bf16),
                          preferred_element_type=f32)

    h = dot11(p["wi"], x) + b_(p["bi"])[None]
    res = h
    for l in range(num_layers):
        dil = 2 ** l
        pad = dil * (k - 1) // 2
        wf = jnp.transpose(p["wf"][l], (1, 2, 0)).astype(bf16)   # (k,O,I) -> (O,I,k)
        wg = jnp.transpose(p["wg"][l], (1, 2, 0)).astype(bf16)
        hb = h.astype(bf16)
        f = jax.lax.conv_general_dilated(
            hb, wf, (1,), [(pad, pad)], rhs_dilation=(dil,),
            dimension_numbers=("NCH", "OIH", "NCH"),
            preferred_element_type=f32) + b_(p["bf"][l])[None]
        g = jax.lax.conv_general_dilated(
            hb, wg, (1,), [(pad, pad)], rhs_dilation=(dil,),
            dimension_numbers=("NCH", "OIH", "NCH"),
            preferred_element_type=f32) + b_(p["bg"][l])[None]
        z = jnp.tanh(f) * jax.nn.sigmoid(g)
        h = dot11(p["w1"][l], z) + b_(p["b1"][l])[None]
        res = res + h
    b, c, length = res.shape
    return res.reshape(b, c, length // ds, ds).mean(-1)


def wavenet_spectrogram_ref(x, params, wave_layers, kernel_size, downsample):
    return jnp.stack([_wave_block_ref(x, params[i], wave_layers[i], kernel_size, downsample)
                      for i in range(len(wave_layers))], axis=1)


# ----------------------------------------------------------------------------
if __name__ == "__main__":
    key = jax.random.PRNGKey(0)
    B, C_IN, L = 2, 3, 64            # B*L = 128 -> exactly one full lane register
    BASE_FILTERS = 32
    WAVE_LAYERS = (3, 2, 1)
    KERNEL_SIZE = 3
    DOWNSAMPLE = 4

    kx, kp = jax.random.split(key)
    x = jax.random.normal(kx, (B, C_IN, L), jnp.float32)
    params = init_wavenet_spectrogram(kp, C_IN, BASE_FILTERS, WAVE_LAYERS, KERNEL_SIZE)

    fwd = jax.jit(lambda xx, pp: wavenet_spectrogram(
        xx, pp, WAVE_LAYERS, KERNEL_SIZE, DOWNSAMPLE))
    out = jax.block_until_ready(fwd(x, params))

    assert out.shape == (B, len(WAVE_LAYERS), BASE_FILTERS, L // DOWNSAMPLE), out.shape

    ref = wavenet_spectrogram_ref(x, params, WAVE_LAYERS, KERNEL_SIZE, DOWNSAMPLE)
    # Both sides use bf16 MXU operands (and bf16-rounded biases) with f32 accumulation;
    # 5e-3 covers accumulation-order rounding differences through the residual stack.
    np.testing.assert_allclose(np.asarray(out), np.asarray(ref), rtol=5e-3, atol=5e-3)

    print("KERNEL_OK")
</pallas_src>

<mosaic_0001>
module attributes {stable_mosaic.version = 11 : i64} {
  func.func @kernel(%arg0: i32, %arg1: memref<3xi32, #tpu.memory_space<smem>>, %arg2: memref<1x4x128xbf16, #tpu.memory_space<vmem>>, %arg3: memref<1x32x4xbf16, #tpu.memory_space<vmem>>, %arg4: memref<1x3x64x97xbf16, #tpu.memory_space<vmem>>, %arg5: memref<1x3x32x33xbf16, #tpu.memory_space<vmem>>, %arg6: memref<6x1x128xf32, #tpu.memory_space<vmem>>, %arg7: memref<1x32x128xf32, #tpu.memory_space<vmem>>, %arg8: memref<32x128xf32, #tpu.memory_space<vmem>>) attributes {dimension_semantics = [#tpu.dimension_semantics<parallel>], iteration_bounds = array<i64: 3>, scalar_prefetch = 1 : i64, scratch_operands = 1 : i64, tpu.core_type = #tpu.core_type<tc>, window_params = [{pipeline_mode = #tpu.pipeline_mode<synchronous>, transform_indices = @transform_0, window_bounds = array<i64: 1, 4, 128>}, {transform_indices = @transform_1, window_bounds = array<i64: 1, 32, 4>}, {transform_indices = @transform_2, window_bounds = array<i64: 1, 3, 64, 97>}, {transform_indices = @transform_3, window_bounds = array<i64: 1, 3, 32, 33>}, {pipeline_mode = #tpu.pipeline_mode<synchronous>, transform_indices = @transform_4, window_bounds = array<i64: 6, 1, 128>}, {transform_indices = @transform_5, window_bounds = array<i64: 1, 32, 128>}]} {
    %0 = arith.index_cast %arg0 : i32 to index
    %1 = memref.load %arg1[%0] : memref<3xi32, #tpu.memory_space<smem>>
    %cst = arith.constant 1.000000e+00 : bf16
    %2 = vector.broadcast %cst : bf16 to vector<1x128xbf16>
    %c0 = arith.constant 0 : index
    %c0_0 = arith.constant 0 : index
    %c0_1 = arith.constant 0 : index
    %3 = vector.load %arg3[%c0, %c0_0, %c0_1] : memref<1x32x4xbf16, #tpu.memory_space<vmem>>, vector<1x32x4xbf16>
    %4 = vector.shape_cast %3 : vector<1x32x4xbf16> to vector<32x4xbf16>
    %c0_2 = arith.constant 0 : index
    %c0_3 = arith.constant 0 : index
    %c0_4 = arith.constant 0 : index
    %5 = vector.load %arg2[%c0_2, %c0_3, %c0_4] : memref<1x4x128xbf16, #tpu.memory_space<vmem>>, vector<1x4x128xbf16>
    %6 = vector.shape_cast %5 : vector<1x4x128xbf16> to vector<4x128xbf16>
    %cst_5 = arith.constant dense<0.000000e+00> : vector<32x128xf32>
    %7 = tpu.matmul %4, %6, %cst_5 {dimension_numbers = #tpu.dot_dimension_numbers<[1], [0], [0], [1], [0, 0, 1, 1], [], []>} : vector<32x4xbf16>, vector<4x128xbf16>, vector<32x128xf32> -> vector<32x128xf32>
    %c0_6 = arith.constant 0 : index
    %c0_7 = arith.constant 0 : index
    %8 = vector.load %arg8[%c0_6, %c0_7] : memref<32x128xf32, #tpu.memory_space<vmem>>, vector<32x128xf32>
    tpu.vector_store %arg8[%c0_6, %c0_7], %7 {strides = array<i32>} : memref<32x128xf32, #tpu.memory_space<vmem>>, vector<32x128xf32>,
    %c0_8 = arith.constant 0 : index
    %c0_9 = arith.constant 0 : index
    %c0_10 = arith.constant 0 : index
    %9 = vector.load %arg7[%c0_8, %c0_9, %c0_10] : memref<1x32x128xf32, #tpu.memory_space<vmem>>, vector<1x32x128xf32>
    %10 = vector.shape_cast %9 : vector<1x32x128xf32> to vector<32x128xf32>
    %11 = vector.shape_cast %7 : vector<32x128xf32> to vector<1x32x128xf32>
    tpu.vector_store %arg7[%c0_8, %c0_9, %c0_10], %11 {strides = array<i32>} : memref<1x32x128xf32, #tpu.memory_space<vmem>>, vector<1x32x128xf32>,
    %c0_i32 = arith.constant 0 : i32
    %12 = arith.cmpi sgt, %1, %c0_i32 : i32
    %13 = arith.extui %12 : i1 to i32
    %c0_i32_11 = arith.constant 0 : i32
    %14 = arith.cmpi ne, %13, %c0_i32_11 : i32
    scf.if %14 {
      %c0_14 = arith.constant 0 : index
      %c0_15 = arith.constant 0 : index
      %21 = vector.load %arg8[%c0_14, %c0_15] : memref<32x128xf32, #tpu.memory_space<vmem>>, vector<32x128xf32>
      %22 = arith.truncf %21 : vector<32x128xf32> to vector<32x128xbf16>
      %23 = vector.extract_strided_slice %22 {offsets = [0, 127], sizes = [32, 1], strides = [1, 1]} : vector<32x128xbf16> to vector<32x1xbf16>
      %24 = vector.extract_strided_slice %22 {offsets = [0, 0], sizes = [32, 127], strides = [1, 1]} : vector<32x128xbf16> to vector<32x127xbf16>
      %25 = tpu.concatenate %23, %24 in 1 : vector<32x1xbf16>, vector<32x127xbf16> -> vector<32x128xbf16>
      %c2 = arith.constant 2 : index
      %c0_16 = arith.constant 0 : index
      %c0_17 = arith.constant 0 : index
      %26 = vector.load %arg6[%c2, %c0_16, %c0_17] : memref<6x1x128xf32, #tpu.memory_space<vmem>>, vector<1x1x128xf32>
      %27 = vector.shape_cast %26 : vector<1x1x128xf32> to vector<1x128xf32>
      %cst_18 = arith.constant 0.000000e+00 : f32
      %28 = vector.broadcast %cst_18 : f32 to vector<1x128xf32>
      %29 = arith.cmpf one, %27, %28 : vector<1x128xf32>
      %cst_19 = arith.constant 0.000000e+00 : bf16
      %30 = vector.broadcast %cst_19 : bf16 to vector<32x128xbf16>
      %31 = vector.shape_cast %29 : vector<1x128xi1> to vector<1x128xi1>
      %32 = vector.broadcast %31 : vector<1x128xi1> to vector<32x128xi1>
      %33 = arith.select %32, %25, %30 : vector<32x128xi1>, vector<32x128xbf16>
      %34 = vector.extract_strided_slice %22 {offsets = [0, 1], sizes = [32, 127], strides = [1, 1]} : vector<32x128xbf16> to vector<32x127xbf16>
      %35 = vector.extract_strided_slice %22 {offsets = [0, 0], sizes = [32, 1], strides = [1, 1]} : vector<32x128xbf16> to vector<32x1xbf16>
      %36 = tpu.concatenate %34, %35 in 1 : vector<32x127xbf16>, vector<32x1xbf16> -> vector<32x128xbf16>
      %c3 = arith.constant 3 : index
      %c0_20 = arith.constant 0 : index
      %c0_21 = arith.constant 0 : index
      %37 = vector.load %arg6[%c3, %c0_20, %c0_21] : memref<6x1x128xf32, #tpu.memory_space<vmem>>, vector<1x1x128xf32>
      %38 = vector.shape_cast %37 : vector<1x1x128xf32> to vector<1x128xf32>
      %cst_22 = arith.constant 0.000000e+00 : f32
      %39 = vector.broadcast %cst_22 : f32 to vector<1x128xf32>
      %40 = arith.cmpf one, %38, %39 : vector<1x128xf32>
      %cst_23 = arith.constant 0.000000e+00 : bf16
      %41 = vector.broadcast %cst_23 : bf16 to vector<32x128xbf16>
      %42 = vector.shape_cast %40 : vector<1x128xi1> to vector<1x128xi1>
      %43 = vector.broadcast %42 : vector<1x128xi1> to vector<32x128xi1>
      %44 = arith.select %43, %36, %41 : vector<32x128xi1>, vector<32x128xbf16>
      %45 = tpu.concatenate %33, %22, %44, %2 in 0 : vector<32x128xbf16>, vector<32x128xbf16>, vector<32x128xbf16>, vector<1x128xbf16> -> vector<97x128xbf16>
      %c0_24 = arith.constant 0 : index
      %c0_25 = arith.constant 0 : index
      %c0_26 = arith.constant 0 : index
      %c0_27 = arith.constant 0 : index
      %46 = vector.load %arg4[%c0_24, %c0_25, %c0_26, %c0_27] : memref<1x3x64x97xbf16, #tpu.memory_space<vmem>>, vector<1x1x64x97xbf16>
      %47 = vector.shape_cast %46 : vector<1x1x64x97xbf16> to vector<64x97xbf16>
      %cst_28 = arith.constant dense<0.000000e+00> : vector<64x128xf32>
      %48 = tpu.matmul %47, %45, %cst_28 {dimension_numbers = #tpu.dot_dimension_numbers<[1], [0], [0], [1], [0, 0, 1, 1], [], []>} : vector<64x97xbf16>, vector<97x128xbf16>, vector<64x128xf32> -> vector<64x128xf32>
      %49 = vector.extract_strided_slice %48 {offsets = [0, 0], sizes = [32, 128], strides = [1, 1]} : vector<64x128xf32> to vector<32x128xf32>
      %50 = math.tanh %49 : vector<32x128xf32>
      %51 = vector.extract_strided_slice %48 {offsets = [32, 0], sizes = [32, 128], strides = [1, 1]} : vector<64x128xf32> to vector<32x128xf32>
      %52 = arith.negf %51 : vector<32x128xf32>
      %53 = math.exp %52 : vector<32x128xf32>
      %cst_29 = arith.constant 1.000000e+00 : f32
      %54 = vector.broadcast %cst_29 : f32 to vector<32x128xf32>
      %55 = arith.addf %54, %53 : vector<32x128xf32>
      %56 = arith.divf %54, %55 : vector<32x128xf32>
      %57 = arith.mulf %50, %56 : vector<32x128xf32>
      %58 = arith.truncf %57 : vector<32x128xf32> to vector<32x128xbf16>
      %59 = tpu.concatenate %58, %2 in 0 : vector<32x128xbf16>, vector<1x128xbf16> -> vector<33x128xbf16>
      %c0_30 = arith.constant 0 : index
      %c0_31 = arith.constant 0 : index
      %c0_32 = arith.constant 0 : index
      %c0_33 = arith.constant 0 : index
      %60 = vector.load %arg5[%c0_30, %c0_31, %c0_32, %c0_33] : memref<1x3x32x33xbf16, #tpu.memory_space<vmem>>, vector<1x1x32x33xbf16>
      %61 = vector.shape_cast %60 : vector<1x1x32x33xbf16> to vector<32x33xbf16>
      %cst_34 = arith.constant dense<0.000000e+00> : vector<32x128xf32>
      %62 = tpu.matmul %61, %59, %cst_34 {dimension_numbers = #tpu.dot_dimension_numbers<[1], [0], [0], [1], [0, 0, 1, 1], [], []>} : vector<32x33xbf16>, vector<33x128xbf16>, vector<32x128xf32> -> vector<32x128xf32>
      %c0_35 = arith.constant 0 : index
      %c0_36 = arith.constant 0 : index
      %63 = vector.load %arg8[%c0_35, %c0_36] : memref<32x128xf32, #tpu.memory_space<vmem>>, vector<32x128xf32>
      tpu.vector_store %arg8[%c0_35, %c0_36], %62 {strides = array<i32>} : memref<32x128xf32, #tpu.memory_space<vmem>>, vector<32x128xf32>,
      %c0_37 = arith.constant 0 : index
      %c0_38 = arith.constant 0 : index
      %c0_39 = arith.constant 0 : index
      %64 = vector.load %arg7[%c0_37, %c0_38, %c0_39] : memref<1x32x128xf32, #tpu.memory_space<vmem>>, vector<1x32x128xf32>
      %65 = vector.shape_cast %64 : vector<1x32x128xf32> to vector<32x128xf32>
      %66 = arith.addf %65, %62 : vector<32x128xf32>
      %c0_40 = arith.constant 0 : index
      %c0_41 = arith.constant 0 : index
      %c0_42 = arith.constant 0 : index
      %67 = vector.load %arg7[%c0_40, %c0_41, %c0_42] : memref<1x32x128xf32, #tpu.memory_space<vmem>>, vector<1x32x128xf32>
      %68 = vector.shape_cast %67 : vector<1x32x128xf32> to vector<32x128xf32>
      %69 = vector.shape_cast %66 : vector<32x128xf32> to vector<1x32x128xf32>
      tpu.vector_store %arg7[%c0_40, %c0_41, %c0_42], %69 {strides = array<i32>} : memref<1x32x128xf32, #tpu.memory_space<vmem>>, vector<1x32x128xf32>,
    } else {
    }
    %c1_i32 = arith.constant 1 : i32
    %15 = arith.cmpi sgt, %1, %c1_i32 : i32
    %16 = arith.extui %15 : i1 to i32
    %c0_i32_12 = arith.constant 0 : i32
    %17 = arith.cmpi ne, %16, %c0_i32_12 : i32
    scf.if %17 {
      %c0_14 = arith.constant 0 : index
      %c0_15 = arith.constant 0 : index
      %21 = vector.load %arg8[%c0_14, %c0_15] : memref<32x128xf32, #tpu.memory_space<vmem>>, vector<32x128xf32>
      %22 = arith.truncf %21 : vector<32x128xf32> to vector<32x128xbf16>
      %23 = vector.extract_strided_slice %22 {offsets = [0, 126], sizes = [32, 2], strides = [1, 1]} : vector<32x128xbf16> to vector<32x2xbf16>
      %24 = vector.extract_strided_slice %22 {offsets = [0, 0], sizes = [32, 126], strides = [1, 1]} : vector<32x128xbf16> to vector<32x126xbf16>
      %25 = tpu.concatenate %23, %24 in 1 : vector<32x2xbf16>, vector<32x126xbf16> -> vector<32x128xbf16>
      %c1 = arith.constant 1 : index
      %c0_16 = arith.constant 0 : index
      %c0_17 = arith.constant 0 : index
      %26 = vector.load %arg6[%c1, %c0_16, %c0_17] : memref<6x1x128xf32, #tpu.memory_space<vmem>>, vector<1x1x128xf32>
      %27 = vector.shape_cast %26 : vector<1x1x128xf32> to vector<1x128xf32>
      %cst_18 = arith.constant 0.000000e+00 : f32
      %28 = vector.broadcast %cst_18 : f32 to vector<1x128xf32>
      %29 = arith.cmpf one, %27, %28 : vector<1x128xf32>
      %cst_19 = arith.constant 0.000000e+00 : bf16
      %30 = vector.broadcast %cst_19 : bf16 to vector<32x128xbf16>
      %31 = vector.shape_cast %29 : vector<1x128xi1> to vector<1x128xi1>
      %32 = vector.broadcast %31 : vector<1x128xi1> to vector<32x128xi1>
      %33 = arith.select %32, %25, %30 : vector<32x128xi1>, vector<32x128xbf16>
      %34 = vector.extract_strided_slice %22 {offsets = [0, 2], sizes = [32, 126], strides = [1, 1]} : vector<32x128xbf16> to vector<32x126xbf16>
      %35 = vector.extract_strided_slice %22 {offsets = [0, 0], sizes = [32, 2], strides = [1, 1]} : vector<32x128xbf16> to vector<32x2xbf16>
      %36 = tpu.concatenate %34, %35 in 1 : vector<32x126xbf16>, vector<32x2xbf16> -> vector<32x128xbf16>
      %c4 = arith.constant 4 : index
      %c0_20 = arith.constant 0 : index
      %c0_21 = arith.constant 0 : index
      %37 = vector.load %arg6[%c4, %c0_20, %c0_21] : memref<6x1x128xf32, #tpu.memory_space<vmem>>, vector<1x1x128xf32>
      %38 = vector.shape_cast %37 : vector<1x1x128xf32> to vector<1x128xf32>
      %cst_22 = arith.constant 0.000000e+00 : f32
      %39 = vector.broadcast %cst_22 : f32 to vector<1x128xf32>
      %40 = arith.cmpf one, %38, %39 : vector<1x128xf32>
      %cst_23 = arith.constant 0.000000e+00 : bf16
      %41 = vector.broadcast %cst_23 : bf16 to vector<32x128xbf16>
      %42 = vector.shape_cast %40 : vector<1x128xi1> to vector<1x128xi1>
      %43 = vector.broadcast %42 : vector<1x128xi1> to vector<32x128xi1>
      %44 = arith.select %43, %36, %41 : vector<32x128xi1>, vector<32x128xbf16>
      %45 = tpu.concatenate %33, %22, %44, %2 in 0 : vector<32x128xbf16>, vector<32x128xbf16>, vector<32x128xbf16>, vector<1x128xbf16> -> vector<97x128xbf16>
      %c0_24 = arith.constant 0 : index
      %c1_25 = arith.constant 1 : index
      %c0_26 = arith.constant 0 : index
      %c0_27 = arith.constant 0 : index
      %46 = vector.load %arg4[%c0_24, %c1_25, %c0_26, %c0_27] : memref<1x3x64x97xbf16, #tpu.memory_space<vmem>>, vector<1x1x64x97xbf16>
      %47 = vector.shape_cast %46 : vector<1x1x64x97xbf16> to vector<64x97xbf16>
      %cst_28 = arith.constant dense<0.000000e+00> : vector<64x128xf32>
      %48 = tpu.matmul %47, %45, %cst_28 {dimension_numbers = #tpu.dot_dimension_numbers<[1], [0], [0], [1], [0, 0, 1, 1], [], []>} : vector<64x97xbf16>, vector<97x128xbf16>, vector<64x128xf32> -> vector<64x128xf32>
      %49 = vector.extract_strided_slice %48 {offsets = [0, 0], sizes = [32, 128], strides = [1, 1]} : vector<64x128xf32> to vector<32x128xf32>
      %50 = math.tanh %49 : vector<32x128xf32>
      %51 = vector.extract_strided_slice %48 {offsets = [32, 0], sizes = [32, 128], strides = [1, 1]} : vector<64x128xf32> to vector<32x128xf32>
      %52 = arith.negf %51 : vector<32x128xf32>
      %53 = math.exp %52 : vector<32x128xf32>
      %cst_29 = arith.constant 1.000000e+00 : f32
      %54 = vector.broadcast %cst_29 : f32 to vector<32x128xf32>
      %55 = arith.addf %54, %53 : vector<32x128xf32>
      %56 = arith.divf %54, %55 : vector<32x128xf32>
      %57 = arith.mulf %50, %56 : vector<32x128xf32>
      %58 = arith.truncf %57 : vector<32x128xf32> to vector<32x128xbf16>
      %59 = tpu.concatenate %58, %2 in 0 : vector<32x128xbf16>, vector<1x128xbf16> -> vector<33x128xbf16>
      %c0_30 = arith.constant 0 : index
      %c1_31 = arith.constant 1 : index
      %c0_32 = arith.constant 0 : index
      %c0_33 = arith.constant 0 : index
      %60 = vector.load %arg5[%c0_30, %c1_31, %c0_32, %c0_33] : memref<1x3x32x33xbf16, #tpu.memory_space<vmem>>, vector<1x1x32x33xbf16>
      %61 = vector.shape_cast %60 : vector<1x1x32x33xbf16> to vector<32x33xbf16>
      %cst_34 = arith.constant dense<0.000000e+00> : vector<32x128xf32>
      %62 = tpu.matmul %61, %59, %cst_34 {dimension_numbers = #tpu.dot_dimension_numbers<[1], [0], [0], [1], [0, 0, 1, 1], [], []>} : vector<32x33xbf16>, vector<33x128xbf16>, vector<32x128xf32> -> vector<32x128xf32>
      %c0_35 = arith.constant 0 : index
      %c0_36 = arith.constant 0 : index
      %63 = vector.load %arg8[%c0_35, %c0_36] : memref<32x128xf32, #tpu.memory_space<vmem>>, vector<32x128xf32>
      tpu.vector_store %arg8[%c0_35, %c0_36], %62 {strides = array<i32>} : memref<32x128xf32, #tpu.memory_space<vmem>>, vector<32x128xf32>,
      %c0_37 = arith.constant 0 : index
      %c0_38 = arith.constant 0 : index
      %c0_39 = arith.constant 0 : index
      %64 = vector.load %arg7[%c0_37, %c0_38, %c0_39] : memref<1x32x128xf32, #tpu.memory_space<vmem>>, vector<1x32x128xf32>
      %65 = vector.shape_cast %64 : vector<1x32x128xf32> to vector<32x128xf32>
      %66 = arith.addf %65, %62 : vector<32x128xf32>
      %c0_40 = arith.constant 0 : index
      %c0_41 = arith.constant 0 : index
      %c0_42 = arith.constant 0 : index
      %67 = vector.load %arg7[%c0_40, %c0_41, %c0_42] : memref<1x32x128xf32, #tpu.memory_space<vmem>>, vector<1x32x128xf32>
      %68 = vector.shape_cast %67 : vector<1x32x128xf32> to vector<32x128xf32>
      %69 = vector.shape_cast %66 : vector<32x128xf32> to vector<1x32x128xf32>
      tpu.vector_store %arg7[%c0_40, %c0_41, %c0_42], %69 {strides = array<i32>} : memref<1x32x128xf32, #tpu.memory_space<vmem>>, vector<1x32x128xf32>,
    } else {
    }
    %c2_i32 = arith.constant 2 : i32
    %18 = arith.cmpi sgt, %1, %c2_i32 : i32
    %19 = arith.extui %18 : i1 to i32
    %c0_i32_13 = arith.constant 0 : i32
    %20 = arith.cmpi ne, %19, %c0_i32_13 : i32
    scf.if %20 {
      %c0_14 = arith.constant 0 : index
      %c0_15 = arith.constant 0 : index
      %21 = vector.load %arg8[%c0_14, %c0_15] : memref<32x128xf32, #tpu.memory_space<vmem>>, vector<32x128xf32>
      %22 = arith.truncf %21 : vector<32x128xf32> to vector<32x128xbf16>
      %23 = vector.extract_strided_slice %22 {offsets = [0, 124], sizes = [32, 4], strides = [1, 1]} : vector<32x128xbf16> to vector<32x4xbf16>
      %24 = vector.extract_strided_slice %22 {offsets = [0, 0], sizes = [32, 124], strides = [1, 1]} : vector<32x128xbf16> to vector<32x124xbf16>
      %25 = tpu.concatenate %23, %24 in 1 : vector<32x4xbf16>, vector<32x124xbf16> -> vector<32x128xbf16>
      %c0_16 = arith.constant 0 : index
      %c0_17 = arith.constant 0 : index
      %c0_18 = arith.constant 0 : index
      %26 = vector.load %arg6[%c0_16, %c0_17, %c0_18] : memref<6x1x128xf32, #tpu.memory_space<vmem>>, vector<1x1x128xf32>
      %27 = vector.shape_cast %26 : vector<1x1x128xf32> to vector<1x128xf32>
      %cst_19 = arith.constant 0.000000e+00 : f32
      %28 = vector.broadcast %cst_19 : f32 to vector<1x128xf32>
      %29 = arith.cmpf one, %27, %28 : vector<1x128xf32>
      %cst_20 = arith.constant 0.000000e+00 : bf16
      %30 = vector.broadcast %cst_20 : bf16 to vector<32x128xbf16>
      %31 = vector.shape_cast %29 : vector<1x128xi1> to vector<1x128xi1>
      %32 = vector.broadcast %31 : vector<1x128xi1> to vector<32x128xi1>
      %33 = arith.select %32, %25, %30 : vector<32x128xi1>, vector<32x128xbf16>
      %34 = vector.extract_strided_slice %22 {offsets = [0, 4], sizes = [32, 124], strides = [1, 1]} : vector<32x128xbf16> to vector<32x124xbf16>
      %35 = vector.extract_strided_slice %22 {offsets = [0, 0], sizes = [32, 4], strides = [1, 1]} : vector<32x128xbf16> to vector<32x4xbf16>
      %36 = tpu.concatenate %34, %35 in 1 : vector<32x124xbf16>, vector<32x4xbf16> -> vector<32x128xbf16>
      %c5 = arith.constant 5 : index
      %c0_21 = arith.constant 0 : index
      %c0_22 = arith.constant 0 : index
      %37 = vector.load %arg6[%c5, %c0_21, %c0_22] : memref<6x1x128xf32, #tpu.memory_space<vmem>>, vector<1x1x128xf32>
      %38 = vector.shape_cast %37 : vector<1x1x128xf32> to vector<1x128xf32>
      %cst_23 = arith.constant 0.000000e+00 : f32
      %39 = vector.broadcast %cst_23 : f32 to vector<1x128xf32>
      %40 = arith.cmpf one, %38, %39 : vector<1x128xf32>
      %cst_24 = arith.constant 0.000000e+00 : bf16
      %41 = vector.broadcast %cst_24 : bf16 to vector<32x128xbf16>
      %42 = vector.shape_cast %40 : vector<1x128xi1> to vector<1x128xi1>
      %43 = vector.broadcast %42 : vector<1x128xi1> to vector<32x128xi1>
      %44 = arith.select %43, %36, %41 : vector<32x128xi1>, vector<32x128xbf16>
      %45 = tpu.concatenate %33, %22, %44, %2 in 0 : vector<32x128xbf16>, vector<32x128xbf16>, vector<32x128xbf16>, vector<1x128xbf16> -> vector<97x128xbf16>
      %c0_25 = arith.constant 0 : index
      %c2 = arith.constant 2 : index
      %c0_26 = arith.constant 0 : index
      %c0_27 = arith.constant 0 : index
      %46 = vector.load %arg4[%c0_25, %c2, %c0_26, %c0_27] : memref<1x3x64x97xbf16, #tpu.memory_space<vmem>>, vector<1x1x64x97xbf16>
      %47 = vector.shape_cast %46 : vector<1x1x64x97xbf16> to vector<64x97xbf16>
      %cst_28 = arith.constant dense<0.000000e+00> : vector<64x128xf32>
      %48 = tpu.matmul %47, %45, %cst_28 {dimension_numbers = #tpu.dot_dimension_numbers<[1], [0], [0], [1], [0, 0, 1, 1], [], []>} : vector<64x97xbf16>, vector<97x128xbf16>, vector<64x128xf32> -> vector<64x128xf32>
      %49 = vector.extract_strided_slice %48 {offsets = [0, 0], sizes = [32, 128], strides = [1, 1]} : vector<64x128xf32> to vector<32x128xf32>
      %50 = math.tanh %49 : vector<32x128xf32>
      %51 = vector.extract_strided_slice %48 {offsets = [32, 0], sizes = [32, 128], strides = [1, 1]} : vector<64x128xf32> to vector<32x128xf32>
      %52 = arith.negf %51 : vector<32x128xf32>
      %53 = math.exp %52 : vector<32x128xf32>
      %cst_29 = arith.constant 1.000000e+00 : f32
      %54 = vector.broadcast %cst_29 : f32 to vector<32x128xf32>
      %55 = arith.addf %54, %53 : vector<32x128xf32>
      %56 = arith.divf %54, %55 : vector<32x128xf32>
      %57 = arith.mulf %50, %56 : vector<32x128xf32>
      %58 = arith.truncf %57 : vector<32x128xf32> to vector<32x128xbf16>
      %59 = tpu.concatenate %58, %2 in 0 : vector<32x128xbf16>, vector<1x128xbf16> -> vector<33x128xbf16>
      %c0_30 = arith.constant 0 : index
      %c2_31 = arith.constant 2 : index
      %c0_32 = arith.constant 0 : index
      %c0_33 = arith.constant 0 : index
      %60 = vector.load %arg5[%c0_30, %c2_31, %c0_32, %c0_33] : memref<1x3x32x33xbf16, #tpu.memory_space<vmem>>, vector<1x1x32x33xbf16>
      %61 = vector.shape_cast %60 : vector<1x1x32x33xbf16> to vector<32x33xbf16>
      %cst_34 = arith.constant dense<0.000000e+00> : vector<32x128xf32>
      %62 = tpu.matmul %61, %59, %cst_34 {dimension_numbers = #tpu.dot_dimension_numbers<[1], [0], [0], [1], [0, 0, 1, 1], [], []>} : vector<32x33xbf16>, vector<33x128xbf16>, vector<32x128xf32> -> vector<32x128xf32>
      %c0_35 = arith.constant 0 : index
      %c0_36 = arith.constant 0 : index
      %63 = vector.load %arg8[%c0_35, %c0_36] : memref<32x128xf32, #tpu.memory_space<vmem>>, vector<32x128xf32>
      tpu.vector_store %arg8[%c0_35, %c0_36], %62 {strides = array<i32>} : memref<32x128xf32, #tpu.memory_space<vmem>>, vector<32x128xf32>,
      %c0_37 = arith.constant 0 : index
      %c0_38 = arith.constant 0 : index
      %c0_39 = arith.constant 0 : index
      %64 = vector.load %arg7[%c0_37, %c0_38, %c0_39] : memref<1x32x128xf32, #tpu.memory_space<vmem>>, vector<1x32x128xf32>
      %65 = vector.shape_cast %64 : vector<1x32x128xf32> to vector<32x128xf32>
      %66 = arith.addf %65, %62 : vector<32x128xf32>
      %c0_40 = arith.constant 0 : index
      %c0_41 = arith.constant 0 : index
      %c0_42 = arith.constant 0 : index
      %67 = vector.load %arg7[%c0_40, %c0_41, %c0_42] : memref<1x32x128xf32, #tpu.memory_space<vmem>>, vector<1x32x128xf32>
      %68 = vector.shape_cast %67 : vector<1x32x128xf32> to vector<32x128xf32>
      %69 = vector.shape_cast %66 : vector<32x128xf32> to vector<1x32x128xf32>
      tpu.vector_store %arg7[%c0_40, %c0_41, %c0_42], %69 {strides = array<i32>} : memref<1x32x128xf32, #tpu.memory_space<vmem>>, vector<1x32x128xf32>,
    } else {
    }
    return
  }
  func.func @transform_0(%arg0: i32, %arg1: memref<3xi32, #tpu.memory_space<smem>>) -> (i32, i32, i32) {
    %c0_i32 = arith.constant 0 : i32
    %c0_i32_0 = arith.constant 0 : i32
    %c0_i32_1 = arith.constant 0 : i32
    %c0_i32_2 = arith.constant 0 : i32
    return %c0_i32, %c0_i32_0, %c0_i32_1 : i32, i32, i32
  }
  func.func @transform_1(%arg0: i32, %arg1: memref<3xi32, #tpu.memory_space<smem>>) -> (i32, i32, i32) {
    %c0_i32 = arith.constant 0 : i32
    %c0_i32_0 = arith.constant 0 : i32
    %c0_i32_1 = arith.constant 0 : i32
    return %arg0, %c0_i32, %c0_i32_0 : i32, i32, i32
  }
  func.func @transform_2(%arg0: i32, %arg1: memref<3xi32, #tpu.memory_space<smem>>) -> (i32, i32, i32, i32) {
    %c0_i32 = arith.constant 0 : i32
    %c0_i32_0 = arith.constant 0 : i32
    %c0_i32_1 = arith.constant 0 : i32
    %c0_i32_2 = arith.constant 0 : i32
    return %arg0, %c0_i32, %c0_i32_0, %c0_i32_1 : i32, i32, i32, i32
  }
  func.func @transform_3(%arg0: i32, %arg1: memref<3xi32, #tpu.memory_space<smem>>) -> (i32, i32, i32, i32) {
    %c0_i32 = arith.constant 0 : i32
    %c0_i32_0 = arith.constant 0 : i32
    %c0_i32_1 = arith.constant 0 : i32
    %c0_i32_2 = arith.constant 0 : i32
    return %arg0, %c0_i32, %c0_i32_0, %c0_i32_1 : i32, i32, i32, i32
  }
  func.func @transform_4(%arg0: i32, %arg1: memref<3xi32, #tpu.memory_space<smem>>) -> (i32, i32, i32) {
    %c0_i32 = arith.constant 0 : i32
    %c0_i32_0 = arith.constant 0 : i32
    %c0_i32_1 = arith.constant 0 : i32
    %c0_i32_2 = arith.constant 0 : i32
    return %c0_i32, %c0_i32_0, %c0_i32_1 : i32, i32, i32
  }
  func.func @transform_5(%arg0: i32, %arg1: memref<3xi32, #tpu.memory_space<smem>>) -> (i32, i32, i32) {
    %c0_i32 = arith.constant 0 : i32
    %c0_i32_0 = arith.constant 0 : i32
    %c0_i32_1 = arith.constant 0 : i32
    return %arg0, %c0_i32, %c0_i32_0 : i32, i32, i32
  }
}

</mosaic_0001>

<llo_original>
// kernel: _lambda_.1
$region0: #{_lambda_.1}
  #allocation0 [shape = 'u32[]', space=smem, size = 0x4, offset = 0x4, fixed_abs, tag = 'smem constant byte address 0x4 - core index']
  #allocation1 [shape = 'u32[144,128]{1,0:T(1,128)}', space=vmem, size = 0x12000, scoped, tag = 'internal scratch']
  #allocation2 [shape = 'f32[32,128]{1,0:T(8,128)}', space=vmem, size = 0x4000, scoped, tag = 'scratch operand']
  #allocation3 [shape = 's32[1]{0}', space=sflag, size = 0x4, scoped, tag = 'scoped memory for _lambda_.1']
  #allocation4 [shape = 'u8[512]{0}', space=smem, size = 0x200, scoped, tag = 'prefetched SMEM operand 0']
  %s0 = inlined_call_operand.vmem [shape: s32[3], index: 0, kind: input, shape index: {}]
  %s1 = inlined_call_operand.vmem [shape: bf16[1,4,128], index: 1, kind: input, shape index: {}]
  %s2 = inlined_call_operand.vmem [shape: bf16[3,32,4], index: 2, kind: input, shape index: {}]
  %s3 = inlined_call_operand.vmem [shape: bf16[3,3,64,97], index: 3, kind: input, shape index: {}]
  %s4 = inlined_call_operand.vmem [shape: bf16[3,3,32,33], index: 4, kind: input, shape index: {}]
  %s5 = inlined_call_operand.vmem [shape: f32[6,1,128], index: 5, kind: input, shape index: {}]
  %s6 = inlined_call_operand.vmem [shape: f32[3,32,128], index: 6, kind: output, shape index: {}]
  %s7 = sld [smem:[#allocation0]]
  $region65: #{_lambda_.1} parent=0
    _
  %s9 = ssub.s32 1, %s7
  %s10 = scalar_select 0, %s9, %s7
  %s11 = sshll.u32 %s0, 4
  %s12 = int_to_ptr.vmem [resolvable:$true] %s11
  %14 = dma.vmem_to_smem %s12, 16, [#allocation4], [#allocation3]
  %15 = dma.done [#allocation3], 16
  %16 = sfence
  loop: start=0, step=1, limit=5
  $region2: #{_lambda_.1} parent=0 // loop_pre_header
    _
  $region3: #{_lambda_.1} parent=0 // loop_header
    %s18 = sphi 0, %s22
    %p19 = scmp.ge.s32.totalorder %s18, 5
    %s26 = sphi 0, %s26
    %s28 = sphi 0, %s26
    %s29 = sphi 0, %s28
    %s43 = sphi 0, %s29
    %s49 = sphi 0, %s51
    %s52 = sphi 0, %s49
    %s53 = sphi 0, %s52
    %s69 = sphi 0, %s53
    %s75 = sphi 0, %s77
    %s78 = sphi 0, %s75
    %s79 = sphi 0, %s78
    %s95 = sphi 0, %s79
    %s101 = sphi 0, %s103
    %s104 = sphi 0, %s101
    %s105 = sphi 0, %s104
    %s121 = sphi 0, %s105
    %s125 = sphi 0, %s125
    %s127 = sphi 0, %s125
    %s128 = sphi 0, %s127
    %s142 = sphi 0, %s128
    %s148 = sphi 0, %s150
    %s151 = sphi 0, %s148
    %s152 = sphi 0, %s151
    %s168 = sphi 0, %s152
  $region4: #{_lambda_.1} parent=0 // loop_header_branch
    %21 = sbr.rel (%p19) target = $region8
  $region5: #{_lambda_.1} parent=0 // loop_body
    %s23 = ssub.s32 %s18, 1
    %s24 = ssub.s32 %s18, 2
    %s25 = sadd.s32 %s18, 1
    %s27 = sadd.s32 %s26, 1
    %p30 = scmp.eq.s32.totalorder %s18, 2
    %p31 = scmp.ne.s32.totalorder %s26, %s28
    %p32 = scmp.eq.s32.totalorder %s18, 0
    %p33 = por %p31, %p32
    %p34 = scmp.ne.s32.totalorder %s26, %s28
    %p35 = scmp.eq.s32.totalorder %s23, 2
    %p36 = por %p34, %p35
    %p37 = scmp.ne.s32.totalorder %s28, %s29
    %p38 = scmp.eq.s32.totalorder %s23, 0
    %p39 = por %p37, %p38
    %p40 = scmp.ne.s32.totalorder %s28, %s29
    %p41 = scmp.eq.s32.totalorder %s24, 2
    %p42 = por %p40, %p41
    %p44 = scmp.ne.s32.totalorder %s29, %s43
    %p45 = scmp.eq.s32.totalorder %s24, 0
    %p46 = por %p44, %p45
    %s47 = ssub.s32 %s18, %s25
    %p48 = scmp.eq.s32.totalorder %s47, 0
    %s50 = sadd.s32 %s49, 1
    %s51 = scalar_select %p48, %s49, %s50
    %p54 = pneg %p48
    %p55 = scmp.eq.s32.totalorder %s18, 2
    %p56 = por %p54, %p55
    %p57 = scmp.ne.s32.totalorder %s49, %s52
    %p58 = scmp.eq.s32.totalorder %s18, 0
    %p59 = por %p57, %p58
    %p60 = scmp.ne.s32.totalorder %s49, %s52
    %p61 = scmp.eq.s32.totalorder %s23, 2
    %p62 = por %p60, %p61
    %p63 = scmp.ne.s32.totalorder %s52, %s53
    %p64 = scmp.eq.s32.totalorder %s23, 0
    %p65 = por %p63, %p64
    %p66 = scmp.ne.s32.totalorder %s52, %s53
    %p67 = scmp.eq.s32.totalorder %s24, 2
    %p68 = por %p66, %p67
    %p70 = scmp.ne.s32.totalorder %s53, %s69
    %p71 = scmp.eq.s32.totalorder %s24, 0
    %p72 = por %p70, %p71
    %s73 = ssub.s32 %s18, %s25
    %p74 = scmp.eq.s32.totalorder %s73, 0
    %s76 = sadd.s32 %s75, 1
    %s77 = scalar_select %p74, %s75, %s76
    %p80 = pneg %p74
    %p81 = scmp.eq.s32.totalorder %s18, 2
    %p82 = por %p80, %p81
    %p83 = scmp.ne.s32.totalorder %s75, %s78
    %p84 = scmp.eq.s32.totalorder %s18, 0
    %p85 = por %p83, %p84
    %p86 = scmp.ne.s32.totalorder %s75, %s78
    %p87 = scmp.eq.s32.totalorder %s23, 2
    %p88 = por %p86, %p87
    %p89 = scmp.ne.s32.totalorder %s78, %s79
    %p90 = scmp.eq.s32.totalorder %s23, 0
    %p91 = por %p89, %p90
    %p92 = scmp.ne.s32.totalorder %s78, %s79
    %p93 = scmp.eq.s32.totalorder %s24, 2
    %p94 = por %p92, %p93
    %p96 = scmp.ne.s32.totalorder %s79, %s95
    %p97 = scmp.eq.s32.totalorder %s24, 0
    %p98 = por %p96, %p97
    %s99 = ssub.s32 %s18, %s25
    %p100 = scmp.eq.s32.totalorder %s99, 0
    %s102 = sadd.s32 %s101, 1
    %s103 = scalar_select %p100, %s101, %s102
    %p106 = pneg %p100
    %p107 = scmp.eq.s32.totalorder %s18, 2
    %p108 = por %p106, %p107
    %p109 = scmp.ne.s32.totalorder %s101, %s104
    %p110 = scmp.eq.s32.totalorder %s18, 0
    %p111 = por %p109, %p110
    %p112 = scmp.ne.s32.totalorder %s101, %s104
    %p113 = scmp.eq.s32.totalorder %s23, 2
    %p114 = por %p112, %p113
    %p115 = scmp.ne.s32.totalorder %s104, %s105
    %p116 = scmp.eq.s32.totalorder %s23, 0
    %p117 = por %p115, %p116
    %p118 = scmp.ne.s32.totalorder %s104, %s105
    %p119 = scmp.eq.s32.totalorder %s24, 2
    %p120 = por %p118, %p119
    %p122 = scmp.ne.s32.totalorder %s105, %s121
    %p123 = scmp.eq.s32.totalorder %s24, 0
    %p124 = por %p122, %p123
    %s126 = sadd.s32 %s125, 1
    %p129 = scmp.eq.s32.totalorder %s18, 2
    %p130 = scmp.ne.s32.totalorder %s125, %s127
    %p131 = scmp.eq.s32.totalorder %s18, 0
    %p132 = por %p130, %p131
    %p133 = scmp.ne.s32.totalorder %s125, %s127
    %p134 = scmp.eq.s32.totalorder %s23, 2
    %p135 = por %p133, %p134
    %p136 = scmp.ne.s32.totalorder %s127, %s128
    %p137 = scmp.eq.s32.totalorder %s23, 0
    %p138 = por %p136, %p137
    %p139 = scmp.ne.s32.totalorder %s127, %s128
    %p140 = scmp.eq.s32.totalorder %s24, 2
    %p141 = por %p139, %p140
    %p143 = scmp.ne.s32.totalorder %s128, %s142
    %p144 = scmp.eq.s32.totalorder %s24, 0
    %p145 = por %p143, %p144
    %s146 = ssub.s32 %s18, %s25
    %p147 = scmp.eq.s32.totalorder %s146, 0
    %s149 = sadd.s32 %s148, 1
    %s150 = scalar_select %p147, %s148, %s149
    %p153 = pneg %p147
    %p154 = scmp.eq.s32.totalorder %s18, 2
    %p155 = por %p153, %p154
    %p156 = scmp.ne.s32.totalorder %s148, %s151
    %p157 = scmp.eq.s32.totalorder %s18, 0
    %p158 = por %p156, %p157
    %p159 = scmp.ne.s32.totalorder %s148, %s151
    %p160 = scmp.eq.s32.totalorder %s23, 2
    %p161 = por %p159, %p160
    %p162 = scmp.ne.s32.totalorder %s151, %s152
    %p163 = scmp.eq.s32.totalorder %s23, 0
    %p164 = por %p162, %p163
    %p165 = scmp.ne.s32.totalorder %s151, %s152
    %p166 = scmp.eq.s32.totalorder %s24, 2
    %p167 = por %p165, %p166
    %p169 = scmp.ne.s32.totalorder %s152, %s168
    %p170 = scmp.eq.s32.totalorder %s24, 0
    %p171 = por %p169, %p170
    %p172 = scmp.le.s32.totalorder 1, %s18
    %p173 = scmp.lt.s32.totalorder %s18, 4
    %p174 = pnand %p172, %p173
    %p175 = pneg %p174
    // Predicated region
    $region9: #{_lambda_.1} parent=5 // pred_check
      _
    $region10: #{_lambda_.1} parent=5 // pred_check_branch
      %177 = sbr.rel (%p174) target = $region12
    $region11: #{_lambda_.1} parent=5 // pred_region
      %s178 = ssub.s32 %s18, 1
      // Predicated region
      $region13: #{_lambda_.1} parent=11 // pred_check
        %p179 = pneg %p39
      $region14: #{_lambda_.1} parent=11 // pred_check_branch
        %181 = sbr.rel (%p179) target = $region16
      $region15: #{_lambda_.1} parent=11 // pred_region
        _
      $region16: #{_lambda_.1} parent=11 // pred_fallthru
        _
      // Predicated region
      $region17: #{_lambda_.1} parent=11 // pred_check
        %p182 = pneg %p138
      $region18: #{_lambda_.1} parent=11 // pred_check_branch
        %184 = sbr.rel (%p182) target = $region20
      $region19: #{_lambda_.1} parent=11 // pred_region
        _
      $region20: #{_lambda_.1} parent=11 // pred_fallthru
        _
    $region12: #{_lambda_.1} parent=5 // pred_fallthru
      _
    %p185 = scmp.lt.s32.totalorder %s18, 3
    // Predicated region
    $region21: #{_lambda_.1} parent=5 // pred_check
      %p186 = pneg %p185
    $region22: #{_lambda_.1} parent=5 // pred_check_branch
      %188 = sbr.rel (%p186) target = $region24
    $region23: #{_lambda_.1} parent=5 // pred_region
      // Predicated region
      $region25: #{_lambda_.1} parent=23 // pred_check
        %p189 = pneg %p59
      $region26: #{_lambda_.1} parent=23 // pred_check_branch
        %191 = sbr.rel (%p189) target = $region28
      $region27: #{_lambda_.1} parent=23 // pred_region
        %p192 = scmp.lt.s32.totalorder %s18, 2
        %s193 = scalar_select %p192, %s18, 2
        %s194 = smul.addr %s193, 4
        %s195 = smul.addr %s194, 4
        %s196 = scalar_lea.vmem %s2, %s195
      $region28: #{_lambda_.1} parent=23 // pred_fallthru
        _
      // Predicated region
      $region29: #{_lambda_.1} parent=23 // pred_check
        %p197 = pneg %p85
      $region30: #{_lambda_.1} parent=23 // pred_check_branch
        %199 = sbr.rel (%p197) target = $region32
      $region31: #{_lambda_.1} parent=23 // pred_region
        %p200 = scmp.lt.s32.totalorder %s18, 2
        %s201 = scalar_select %p200, %s18, 2
        %s202 = smul.addr %s201, 24
        %s203 = smul.addr %s202, 4
        %s204 = scalar_lea.vmem %s3, %s203
      $region32: #{_lambda_.1} parent=23 // pred_fallthru
        _
      // Predicated region
      $region33: #{_lambda_.1} parent=23 // pred_check
        %p205 = pneg %p111
      $region34: #{_lambda_.1} parent=23 // pred_check_branch
        %207 = sbr.rel (%p205) target = $region36
      $region35: #{_lambda_.1} parent=23 // pred_region
        %p208 = scmp.lt.s32.totalorder %s18, 2
        %s209 = scalar_select %p208, %s18, 2
        %s210 = smul.addr %s209, 12
        %s211 = smul.addr %s210, 4
        %s212 = scalar_lea.vmem %s4, %s211
      $region36: #{_lambda_.1} parent=23 // pred_fallthru
        _
    $region24: #{_lambda_.1} parent=5 // pred_fallthru
      _
    %p213 = scmp.le.s32.totalorder 1, %s18
    %p214 = scmp.lt.s32.totalorder %s18, 4
    %p215 = pnand %p213, %p214
    %p216 = pneg %p215
    // Predicated region
    $region37: #{_lambda_.1} parent=5 // pred_check
      _
    $region38: #{_lambda_.1} parent=5 // pred_check_branch
      %218 = sbr.rel (%p215) target = $region40
    $region39: #{_lambda_.1} parent=5 // pred_region
      %s219 = ssub.s32 %s18, 1
      %p220 = pneg %p39
      %p221 = pneg %p36
      %p222 = scmp.lt.s32.totalorder %s23, 2
      %s223 = scalar_select %p222, %s23, 2
      %s224 = smul.addr %s223, 4
      %s225 = smul.addr %s224, 4
      %s226 = scalar_lea.vmem %s2, %s225
      %p227 = pneg %p65
      %p228 = pneg %p62
      %p229 = scmp.lt.s32.totalorder %s23, 2
      %s230 = scalar_select %p229, %s23, 2
      %s231 = smul.addr %s230, 24
      %s232 = smul.addr %s231, 4
      %s233 = scalar_lea.vmem %s3, %s232
      %p234 = pneg %p91
      %p235 = pneg %p88
      %p236 = scmp.lt.s32.totalorder %s23, 2
      %s237 = scalar_select %p236, %s23, 2
      %s238 = smul.addr %s237, 12
      %s239 = smul.addr %s238, 4
      %s240 = scalar_lea.vmem %s4, %s239
      %p241 = pneg %p117
      %p242 = pneg %p114
      %p243 = pneg %p138
      %p244 = pneg %p135
      %p245 = pneg %p164
      %p246 = pneg %p161
      %p247 = scmp.lt.s32.totalorder %s23, 2
      %s248 = scalar_select %p247, %s23, 2
      %s249 = smul.addr %s248, 4
      %s250 = smul.addr %s249, 8
      %s251 = scalar_lea.vmem %s6, %s250
      %p252 = scmp.lt.s32.totalorder %s23, 2
      %s253 = scalar_select %p252, %s23, 2
      %s254 = smul.addr %s253, 4
      %s255 = smul.addr %s254, 4
      %s256 = scalar_lea.vmem %s2, %s255
      %p257 = scmp.lt.s32.totalorder %s23, 2
      %s258 = scalar_select %p257, %s23, 2
      %s259 = smul.addr %s258, 24
      %s260 = smul.addr %s259, 4
      %s261 = scalar_lea.vmem %s3, %s260
      %p262 = scmp.lt.s32.totalorder %s23, 2
      %s263 = scalar_select %p262, %s23, 2
      %s264 = smul.addr %s263, 12
      %s265 = smul.addr %s264, 4
      %s266 = scalar_lea.vmem %s4, %s265
      %p267 = scmp.lt.s32.totalorder %s23, 2
      %s268 = scalar_select %p267, %s23, 2
      %s269 = smul.addr %s268, 4
      %s270 = smul.addr %s269, 8
      %s271 = scalar_lea.vmem %s6, %s270
      %s276 = sld [smem:[#allocation4 + %s23]]
      %v277 = vld [vmem:[%s256] sm:$0xf]
      %v278 = vld [vmem:[%s256 + $0x4] sm:$0xf]
      %v279 = vld [vmem:[%s256 + $0x8] sm:$0xf]
      %v280 = vld [vmem:[%s256 + $0xc] sm:$0xf]
      %v281 = vld [vmem:[%s1] sm:$0x3]
      %v286 = vunpack.c.l.b16 %v277
      %v287 = vunpack.c.l.b16 %v278
      %v288 = vunpack.c.l.b16 %v279
      %v289 = vunpack.c.l.b16 %v280
      %v290 = vpack.c.b16 %v287, %v286
      %v291 = vpack.c.b16 %v289, %v288
      %vm292 = vcmask 31744
      %v294 = vsel %vm292, %v290, 0
      %v297 = vsel %vm292, %v291, 0
      %vm299 = vcmask 1041408
      %v301 = vsel %vm299, %v281, 0
      %303 = vmatprep.subr.bf16.mxu0 0
      %304 = vmatpush1.bf16.msra.mxu0 0
      %305 = vmatprep.subr.bf16.mxu0 0
      %306 = vmatpush1.bf16.msra.mxu0 0
      %307 = vmatprep.subr.bf16.mxu0 0
      %308 = vmatpush1.bf16.msra.mxu0 0
      %309 = vmatprep.subr.bf16.mxu0 0
      %310 = vmatpush1.bf16.msra.mxu0 0
      %311 = vmatprep.subr.bf16.mxu0 0
      %312 = vmatpush1.bf16.msra.mxu0 0
      %313 = vmatprep.subr.bf16.mxu0 0
      %314 = vmatpush1.bf16.msra.mxu0 0
      %315 = vmatprep.subr.bf16.mxu0 0
      %316 = vmatpush1.bf16.msra.mxu0 0
      %317 = vmatprep.subr.bf16.mxu0 0
      %318 = vmatpush1.bf16.msra.mxu0 %v301
      %319 = vmatprep.subr.bf16.mxu0 0
      %320 = vmatpush2.bf16.msra.mxu0 0
      %321 = vmatprep.subr.bf16.mxu0 0
      %322 = vmatpush2.bf16.msra.mxu0 0
      %323 = vmatprep.subr.bf16.mxu0 0
      %324 = vmatpush2.bf16.msra.mxu0 0
      %325 = vmatprep.subr.bf16.mxu0 0
      %326 = vmatpush2.bf16.msra.mxu0 0
      %327 = vmatprep.subr.bf16.mxu0 0
      %328 = vmatpush2.bf16.msra.mxu0 0
      %329 = vmatprep.subr.bf16.mxu0 0
      %330 = vmatpush2.bf16.msra.mxu0 0
      %331 = vmatprep.subr.bf16.mxu0 0
      %332 = vmatpush2.bf16.msra.mxu0 0
      %333 = vmatprep.subr.bf16.mxu0 0
      %334 = vmatpush2.bf16.msra.mxu0 0
      %335 = vmatprep.mubr.bf16.mxu0 0
      %336 = vmatmul.mubr.bf16.gmra.mxu0 %v294
      %v337 = vpop.f32.mrf.mxu0
      %v338 = vadd.f32 0.0, %v337
      %v339 = vpop.f32.mrf.mxu0
      %v340 = vpop.f32.mrf.mxu0
      %v341 = vadd.f32 0.0, %v340
      %v342 = vpop.f32.mrf.mxu0
      %343 = vmatprep.mubr.bf16.mxu0 0
      %344 = vmatmul.mubr.bf16.gmra.mxu0 %v297
      %v345 = vpop.f32.mrf.mxu0
      %v346 = vadd.f32 0.0, %v345
      %v347 = vpop.f32.mrf.mxu0
      %v348 = vpop.f32.mrf.mxu0
      %v349 = vadd.f32 0.0, %v348
      %v350 = vpop.f32.mrf.mxu0
      %351 = vdwg.mxu0
      %352 = vst [vmem:[#allocation2] sm:$0xff] %v338
      %353 = vst [vmem:[#allocation2 + $0x8] sm:$0xff] %v341
      %354 = vst [vmem:[#allocation2 + $0x10] sm:$0xff] %v346
      %355 = vst [vmem:[#allocation2 + $0x18] sm:$0xff] %v349
      %356 = vst [vmem:[%s271] sm:$0xff] %v338
      %357 = vst [vmem:[%s271 + $0x8] sm:$0xff] %v341
      %358 = vst [vmem:[%s271 + $0x10] sm:$0xff] %v346
      %359 = vst [vmem:[%s271 + $0x18] sm:$0xff] %v349
      %p360 = scmp.gt.s32.totalorder %s276, 0
      // Predicated region
      $region41: #{_lambda_.1} parent=39 // pred_check
        %p361 = pneg %p360
      $region42: #{_lambda_.1} parent=39 // pred_check_branch
        %363 = sbr.rel (%p361) target = $region44
      $region43: #{_lambda_.1} parent=39 // pred_region
        %v364 = vld [vmem:[#allocation2] sm:$0xff]
        %v365 = vld [vmem:[#allocation2 + $0x8] sm:$0xff]
        %v366 = vld [vmem:[#allocation2 + $0x10] sm:$0xff]
        %v367 = vld [vmem:[#allocation2 + $0x18] sm:$0xff]
        %v368 = vpack.c.bf16 %v365, %v364
        %v369 = vpack.c.bf16 %v367, %v366
        %372 = vrot.lane.b32.xlu0 %v368, 1
        %v373 = vpop.permute.xlu0 %372
        %374 = vrot.lane.b32.xlu0 %v369, 1
        %v375 = vpop.permute.xlu0 %374
        %s380 = scalar_lea.vmem %s5, 2
        %v381 = vld [vmem:[%s380] sm:$0x1]
        %vm382 = vcmp.ne.f32.partialorder %v381, 0.0
        %v383 = vsel %vm382, 1, 0
        %v384 = vlaneseq
        %v385 = vshrl.u32 %v384, 7
        %v386 = vsub.s32 0, %v385
        %v387 = vrot.slane %v383, %v386
        %vm388 = vcmp.eq.s32.totalorder %v387, 1
        %vm389 = vmpackc.low %vm388, %vm388
        %v390 = vsel %vm389, 65537, 0
        %v391 = vlaneseq
        %v392 = vshrl.u32 %v391, 7
        %v393 = vsub.s32 0, %v392
        %v394 = vrot.slane %v390, %v393
        %vm395 = vcmp.ne.s16.totalorder %v394, 0
        %v396 = vsel %vm395, %v373, 0
        %v397 = vsel %vm395, %v375, 0
        %398 = vrot.lane.b32.xlu0 %v368, 127
        %v399 = vpop.permute.xlu0 %398
        %400 = vrot.lane.b32.xlu0 %v369, 127
        %v401 = vpop.permute.xlu0 %400
        %s406 = scalar_lea.vmem %s5, 3
        %v407 = vld [vmem:[%s406] sm:$0x1]
        %vm408 = vcmp.ne.f32.partialorder %v407, 0.0
        %v409 = vsel %vm408, 1, 0
        %v410 = vlaneseq
        %v411 = vshrl.u32 %v410, 7
        %v412 = vsub.s32 0, %v411
        %v413 = vrot.slane %v409, %v412
        %vm414 = vcmp.eq.s32.totalorder %v413, 1
        %vm415 = vmpackc.low %vm414, %vm414
        %v416 = vsel %vm415, 65537, 0
        %v417 = vlaneseq
        %v418 = vshrl.u32 %v417, 7
        %v419 = vsub.s32 0, %v418
        %v420 = vrot.slane %v416, %v419
        %vm421 = vcmp.ne.s16.totalorder %v420, 0
        %v422 = vsel %vm421, %v399, 0
        %v423 = vsel %vm421, %v401, 0
        %v424 = vld [vmem:[%s261] sm:$0xf]
        %v425 = vld [vmem:[%s261 + $0x4] sm:$0xf]
        %v426 = vld [vmem:[%s261 + $0x8] sm:$0xf]
        %v427 = vld [vmem:[%s261 + $0xc] sm:$0xf]
        %v428 = vld [vmem:[%s261 + $0x10] sm:$0xf]
        %v429 = vld [vmem:[%s261 + $0x14] sm:$0xf]
        %v430 = vld [vmem:[%s261 + $0x18] sm:$0xf]
        %v431 = vld [vmem:[%s261 + $0x1c] sm:$0xf]
        %v440 = vunpack.c.l.b16 %v424
        %v441 = vunpack.c.l.b16 %v425
        %v442 = vunpack.c.l.b16 %v426
        %v443 = vunpack.c.l.b16 %v427
        %v444 = vunpack.c.l.b16 %v428
        %v445 = vunpack.c.l.b16 %v429
        %v446 = vunpack.c.l.b16 %v430
        %v447 = vunpack.c.l.b16 %v431
        %v448 = vpack.c.b16 %v441, %v440
        %v449 = vpack.c.b16 %v443, %v442
        %v450 = vpack.c.b16 %v445, %v444
        %v451 = vpack.c.b16 %v447, %v446
        %vm452 = vcmask 793600
        %v454 = vsel %vm452, %v448, 0
        %v457 = vsel %vm452, %v449, 0
        %v460 = vsel %vm452, %v450, 0
        %v463 = vsel %vm452, %v451, 0
        %vm465 = vcmask 1040384
        %v466 = vsel 0, 4294967295, 65535
        %v467 = vsel %vm465, %v466, 0
        %v469 = vand.u32 1065369472, %v467
        %471 = vmatprep.subr.bf16.mxu0 0
        %472 = vmatpush1.bf16.msra.mxu0 0
        %473 = vmatprep.subr.bf16.mxu0 0
        %474 = vmatpush1.bf16.msra.mxu0 %v469
        %475 = vmatprep.subr.bf16.mxu0 0
        %476 = vmatpush1.bf16.msra.mxu0 %v423
        %477 = vmatprep.subr.bf16.mxu0 0
        %478 = vmatpush1.bf16.msra.mxu0 %v422
        %479 = vmatprep.subr.bf16.mxu0 0
        %480 = vmatpush1.bf16.msra.mxu0 %v369
        %481 = vmatprep.subr.bf16.mxu0 0
        %482 = vmatpush1.bf16.msra.mxu0 %v368
        %483 = vmatprep.subr.bf16.mxu0 0
        %484 = vmatpush1.bf16.msra.mxu0 %v397
        %485 = vmatprep.subr.bf16.mxu0 0
        %486 = vmatpush1.bf16.msra.mxu0 %v396
        %487 = vmatprep.subr.bf16.mxu0 0
        %488 = vmatpush2.bf16.msra.mxu0 0
        %489 = vmatprep.subr.bf16.mxu0 0
        %490 = vmatpush2.bf16.msra.mxu0 0
        %491 = vmatprep.subr.bf16.mxu0 0
        %492 = vmatpush2.bf16.msra.mxu0 0
        %493 = vmatprep.subr.bf16.mxu0 0
        %494 = vmatpush2.bf16.msra.mxu0 0
        %495 = vmatprep.subr.bf16.mxu0 0
        %496 = vmatpush2.bf16.msra.mxu0 0
        %497 = vmatprep.subr.bf16.mxu0 0
        %498 = vmatpush2.bf16.msra.mxu0 0
        %499 = vmatprep.subr.bf16.mxu0 0
        %500 = vmatpush2.bf16.msra.mxu0 0
        %501 = vmatprep.subr.bf16.mxu0 0
        %502 = vmatpush2.bf16.msra.mxu0 0
        %503 = vmatprep.mubr.bf16.mxu0 0
        %504 = vmatmul.mubr.bf16.gmra.mxu0 %v454
        %v505 = vpop.f32.mrf.mxu0
        %v506 = vadd.f32 0.0, %v505
        %v507 = vpop.f32.mrf.mxu0
        %v508 = vpop.f32.mrf.mxu0
        %v509 = vadd.f32 0.0, %v508
        %v510 = vpop.f32.mrf.mxu0
        %511 = vmatprep.mubr.bf16.mxu0 0
        %512 = vmatmul.mubr.bf16.gmra.mxu0 %v457
        %v513 = vpop.f32.mrf.mxu0
        %v514 = vadd.f32 0.0, %v513
        %v515 = vpop.f32.mrf.mxu0
        %v516 = vpop.f32.mrf.mxu0
        %v517 = vadd.f32 0.0, %v516
        %v518 = vpop.f32.mrf.mxu0
        %519 = vmatprep.mubr.bf16.mxu0 0
        %520 = vmatmul.mubr.bf16.gmra.mxu0 %v460
        %v521 = vpop.f32.mrf.mxu0
        %v522 = vadd.f32 0.0, %v521
        %v523 = vpop.f32.mrf.mxu0
        %v524 = vpop.f32.mrf.mxu0
        %v525 = vadd.f32 0.0, %v524
        %v526 = vpop.f32.mrf.mxu0
        %527 = vmatprep.mubr.bf16.mxu0 0
        %528 = vmatmul.mubr.bf16.gmra.mxu0 %v463
        %v529 = vpop.f32.mrf.mxu0
        %v530 = vadd.f32 0.0, %v529
        %v531 = vpop.f32.mrf.mxu0
        %v532 = vpop.f32.mrf.mxu0
        %v533 = vadd.f32 0.0, %v532
        %v534 = vpop.f32.mrf.mxu0
        %535 = vdwg.mxu0
        %v536 = vtanh.pop %v506
        %v537 = vtanh.pop %v509
        %v538 = vtanh.pop %v514
        %v539 = vtanh.pop %v517
        %v540 = vxor.u32 %v522, 2147483648
        %v541 = vxor.u32 %v525, 2147483648
        %v542 = vxor.u32 %v530, 2147483648
        %v543 = vxor.u32 %v533, 2147483648
        %v544 = vmul.f32 %v540, 1.442695
        %v545 = vpow.pop %v544
        %v546 = vmul.f32 %v541, 1.442695
        %v547 = vpow.pop %v546
        %v548 = vmul.f32 %v542, 1.442695
        %v549 = vpow.pop %v548
        %v550 = vmul.f32 %v543, 1.442695
        %v551 = vpow.pop %v550
        %v552 = vadd.f32 %v545, 1.0
        %v553 = vadd.f32 %v547, 1.0
        %v554 = vadd.f32 %v549, 1.0
        %v555 = vadd.f32 %v551, 1.0
        %v556 = vrcp.pop %v552
        %v557 = vmul.f32 1.0, %v556
        %v558 = vrcp.pop %v553
        %v559 = vmul.f32 1.0, %v558
        %v560 = vrcp.pop %v554
        %v561 = vmul.f32 1.0, %v560
        %v562 = vrcp.pop %v555
        %v563 = vmul.f32 1.0, %v562
        %v564 = vmul.f32 %v536, %v557
        %v565 = vmul.f32 %v537, %v559
        %v566 = vmul.f32 %v538, %v561
        %v567 = vmul.f32 %v539, %v563
        %v568 = vpack.c.bf16 %v565, %v564
        %v569 = vpack.c.bf16 %v567, %v566
        %v570 = vld [vmem:[%s266] sm:$0xf]
        %v571 = vld [vmem:[%s266 + $0x4] sm:$0xf]
        %v572 = vld [vmem:[%s266 + $0x8] sm:$0xf]
        %v573 = vld [vmem:[%s266 + $0xc] sm:$0xf]
        %v578 = vunpack.c.l.b16 %v570
        %v579 = vunpack.c.l.b16 %v571
        %v580 = vunpack.c.l.b16 %v572
        %v581 = vunpack.c.l.b16 %v573
        %v582 = vpack.c.b16 %v579, %v578
        %v583 = vpack.c.b16 %v581, %v580
        %vm584 = vcmask 269312
        %v586 = vsel %vm584, %v582, 0
        %v589 = vsel %vm584, %v583, 0
        %591 = vmatprep.subr.bf16.mxu0 0
        %592 = vmatpush1.bf16.msra.mxu0 0
        %593 = vmatprep.subr.bf16.mxu0 0
        %594 = vmatpush1.bf16.msra.mxu0 0
        %595 = vmatprep.subr.bf16.mxu0 0
        %596 = vmatpush1.bf16.msra.mxu0 0
        %597 = vmatprep.subr.bf16.mxu0 0
        %598 = vmatpush1.bf16.msra.mxu0 0
        %599 = vmatprep.subr.bf16.mxu0 0
        %600 = vmatpush1.bf16.msra.mxu0 0
        %601 = vmatprep.subr.bf16.mxu0 0
        %602 = vmatpush1.bf16.msra.mxu0 %v469
        %603 = vmatprep.subr.bf16.mxu0 0
        %604 = vmatpush1.bf16.msra.mxu0 %v569
        %605 = vmatprep.subr.bf16.mxu0 0
        %606 = vmatpush1.bf16.msra.mxu0 %v568
        %607 = vmatprep.subr.bf16.mxu0 0
        %608 = vmatpush2.bf16.msra.mxu0 0
        %609 = vmatprep.subr.bf16.mxu0 0
        %610 = vmatpush2.bf16.msra.mxu0 0
        %611 = vmatprep.subr.bf16.mxu0 0
        %612 = vmatpush2.bf16.msra.mxu0 0
        %613 = vmatprep.subr.bf16.mxu0 0
        %614 = vmatpush2.bf16.msra.mxu0 0
        %615 = vmatprep.subr.bf16.mxu0 0
        %616 = vmatpush2.bf16.msra.mxu0 0
        %617 = vmatprep.subr.bf16.mxu0 0
        %618 = vmatpush2.bf16.msra.mxu0 0
        %619 = vmatprep.subr.bf16.mxu0 0
        %620 = vmatpush2.bf16.msra.mxu0 0
        %621 = vmatprep.subr.bf16.mxu0 0
        %622 = vmatpush2.bf16.msra.mxu0 0
        %623 = vmatprep.mubr.bf16.mxu0 0
        %624 = vmatmul.mubr.bf16.gmra.mxu0 %v586
        %v625 = vpop.f32.mrf.mxu0
        %v626 = vadd.f32 0.0, %v625
        %v627 = vpop.f32.mrf.mxu0
        %v628 = vpop.f32.mrf.mxu0
        %v629 = vadd.f32 0.0, %v628
        %v630 = vpop.f32.mrf.mxu0
        %631 = vmatprep.mubr.bf16.mxu0 0
        %632 = vmatmul.mubr.bf16.gmra.mxu0 %v589
        %v633 = vpop.f32.mrf.mxu0
        %v634 = vadd.f32 0.0, %v633
        %v635 = vpop.f32.mrf.mxu0
        %v636 = vpop.f32.mrf.mxu0
        %v637 = vadd.f32 0.0, %v636
        %v638 = vpop.f32.mrf.mxu0
        %639 = vdwg.mxu0
        %640 = vst [vmem:[#allocation2] sm:$0xff] %v626
        %641 = vst [vmem:[#allocation2 + $0x8] sm:$0xff] %v629
        %642 = vst [vmem:[#allocation2 + $0x10] sm:$0xff] %v634
        %643 = vst [vmem:[#allocation2 + $0x18] sm:$0xff] %v637
        %v644 = vld [vmem:[%s271] sm:$0xff]
        %v645 = vld [vmem:[%s271 + $0x8] sm:$0xff]
        %v646 = vld [vmem:[%s271 + $0x10] sm:$0xff]
        %v647 = vld [vmem:[%s271 + $0x18] sm:$0xff]
        %v648 = vadd.f32 %v644, %v626
        %v649 = vadd.f32 %v645, %v629
        %v650 = vadd.f32 %v646, %v634
        %v651 = vadd.f32 %v647, %v637
        %652 = vst [vmem:[%s271] sm:$0xff] %v648
        %653 = vst [vmem:[%s271 + $0x8] sm:$0xff] %v649
        %654 = vst [vmem:[%s271 + $0x10] sm:$0xff] %v650
        %655 = vst [vmem:[%s271 + $0x18] sm:$0xff] %v651
      $region44: #{_lambda_.1} parent=39 // pred_fallthru
        _
      %p656 = scmp.gt.s32.totalorder %s276, 1
      // Predicated region
      $region45: #{_lambda_.1} parent=39 // pred_check
        %p657 = pneg %p656
      $region46: #{_lambda_.1} parent=39 // pred_check_branch
        %659 = sbr.rel (%p657) target = $region48
      $region47: #{_lambda_.1} parent=39 // pred_region
        %v660 = vld [vmem:[#allocation2] sm:$0xff]
        %v661 = vld [vmem:[#allocation2 + $0x8] sm:$0xff]
        %v662 = vld [vmem:[#allocation2 + $0x10] sm:$0xff]
        %v663 = vld [vmem:[#allocation2 + $0x18] sm:$0xff]
        %v664 = vpack.c.bf16 %v661, %v660
        %v665 = vpack.c.bf16 %v663, %v662
        %668 = vrot.lane.b32.xlu0 %v664, 2
        %v669 = vpop.permute.xlu0 %668
        %670 = vrot.lane.b32.xlu0 %v665, 2
        %v671 = vpop.permute.xlu0 %670
        %s676 = scalar_lea.vmem %s5, 1
        %v677 = vld [vmem:[%s676] sm:$0x1]
        %vm678 = vcmp.ne.f32.partialorder %v677, 0.0
        %v679 = vsel %vm678, 1, 0
        %v680 = vlaneseq
        %v681 = vshrl.u32 %v680, 7
        %v682 = vsub.s32 0, %v681
        %v683 = vrot.slane %v679, %v682
        %vm684 = vcmp.eq.s32.totalorder %v683, 1
        %vm685 = vmpackc.low %vm684, %vm684
        %v686 = vsel %vm685, 65537, 0
        %v687 = vlaneseq
        %v688 = vshrl.u32 %v687, 7
        %v689 = vsub.s32 0, %v688
        %v690 = vrot.slane %v686, %v689
        %vm691 = vcmp.ne.s16.totalorder %v690, 0
        %v692 = vsel %vm691, %v669, 0
        %v693 = vsel %vm691, %v671, 0
        %694 = vrot.lane.b32.xlu0 %v664, 126
        %v695 = vpop.permute.xlu0 %694
        %696 = vrot.lane.b32.xlu0 %v665, 126
        %v697 = vpop.permute.xlu0 %696
        %s702 = scalar_lea.vmem %s5, 4
        %v703 = vld [vmem:[%s702] sm:$0x1]
        %vm704 = vcmp.ne.f32.partialorder %v703, 0.0
        %v705 = vsel %vm704, 1, 0
        %v706 = vlaneseq
        %v707 = vshrl.u32 %v706, 7
        %v708 = vsub.s32 0, %v707
        %v709 = vrot.slane %v705, %v708
        %vm710 = vcmp.eq.s32.totalorder %v709, 1
        %vm711 = vmpackc.low %vm710, %vm710
        %v712 = vsel %vm711, 65537, 0
        %v713 = vlaneseq
        %v714 = vshrl.u32 %v713, 7
        %v715 = vsub.s32 0, %v714
        %v716 = vrot.slane %v712, %v715
        %vm717 = vcmp.ne.s16.totalorder %v716, 0
        %v718 = vsel %vm717, %v695, 0
        %v719 = vsel %vm717, %v697, 0
        %s720 = scalar_lea.vmem %s261, 32
        %v721 = vld [vmem:[%s720] sm:$0xf]
        %v722 = vld [vmem:[%s720 + $0x4] sm:$0xf]
        %v723 = vld [vmem:[%s720 + $0x8] sm:$0xf]
        %v724 = vld [vmem:[%s720 + $0xc] sm:$0xf]
        %v725 = vld [vmem:[%s720 + $0x10] sm:$0xf]
        %v726 = vld [vmem:[%s720 + $0x14] sm:$0xf]
        %v727 = vld [vmem:[%s720 + $0x18] sm:$0xf]
        %v728 = vld [vmem:[%s720 + $0x1c] sm:$0xf]
        %v737 = vunpack.c.l.b16 %v721
        %v738 = vunpack.c.l.b16 %v722
        %v739 = vunpack.c.l.b16 %v723
        %v740 = vunpack.c.l.b16 %v724
        %v741 = vunpack.c.l.b16 %v725
        %v742 = vunpack.c.l.b16 %v726
        %v743 = vunpack.c.l.b16 %v727
        %v744 = vunpack.c.l.b16 %v728
        %v745 = vpack.c.b16 %v738, %v737
        %v746 = vpack.c.b16 %v740, %v739
        %v747 = vpack.c.b16 %v742, %v741
        %v748 = vpack.c.b16 %v744, %v743
        %vm749 = vcmask 793600
        %v751 = vsel %vm749, %v745, 0
        %v754 = vsel %vm749, %v746, 0
        %v757 = vsel %vm749, %v747, 0
        %v760 = vsel %vm749, %v748, 0
        %vm762 = vcmask 1040384
        %v763 = vsel 0, 4294967295, 65535
        %v764 = vsel %vm762, %v763, 0
        %v766 = vand.u32 1065369472, %v764
        %768 = vmatprep.subr.bf16.mxu0 0
        %769 = vmatpush1.bf16.msra.mxu0 0
        %770 = vmatprep.subr.bf16.mxu0 0
        %771 = vmatpush1.bf16.msra.mxu0 %v766
        %772 = vmatprep.subr.bf16.mxu0 0
        %773 = vmatpush1.bf16.msra.mxu0 %v719
        %774 = vmatprep.subr.bf16.mxu0 0
        %775 = vmatpush1.bf16.msra.mxu0 %v718
        %776 = vmatprep.subr.bf16.mxu0 0
        %777 = vmatpush1.bf16.msra.mxu0 %v665
        %778 = vmatprep.subr.bf16.mxu0 0
        %779 = vmatpush1.bf16.msra.mxu0 %v664
        %780 = vmatprep.subr.bf16.mxu0 0
        %781 = vmatpush1.bf16.msra.mxu0 %v693
        %782 = vmatprep.subr.bf16.mxu0 0
        %783 = vmatpush1.bf16.msra.mxu0 %v692
        %784 = vmatprep.subr.bf16.mxu0 0
        %785 = vmatpush2.bf16.msra.mxu0 0
        %786 = vmatprep.subr.bf16.mxu0 0
        %787 = vmatpush2.bf16.msra.mxu0 0
        %788 = vmatprep.subr.bf16.mxu0 0
        %789 = vmatpush2.bf16.msra.mxu0 0
        %790 = vmatprep.subr.bf16.mxu0 0
        %791 = vmatpush2.bf16.msra.mxu0 0
        %792 = vmatprep.subr.bf16.mxu0 0
        %793 = vmatpush2.bf16.msra.mxu0 0
        %794 = vmatprep.subr.bf16.mxu0 0
        %795 = vmatpush2.bf16.msra.mxu0 0
        %796 = vmatprep.subr.bf16.mxu0 0
        %797 = vmatpush2.bf16.msra.mxu0 0
        %798 = vmatprep.subr.bf16.mxu0 0
        %799 = vmatpush2.bf16.msra.mxu0 0
        %800 = vmatprep.mubr.bf16.mxu0 0
        %801 = vmatmul.mubr.bf16.gmra.mxu0 %v751
        %v802 = vpop.f32.mrf.mxu0
        %v803 = vadd.f32 0.0, %v802
        %v804 = vpop.f32.mrf.mxu0
        %v805 = vpop.f32.mrf.mxu0
        %v806 = vadd.f32 0.0, %v805
        %v807 = vpop.f32.mrf.mxu0
        %808 = vmatprep.mubr.bf16.mxu0 0
        %809 = vmatmul.mubr.bf16.gmra.mxu0 %v754
        %v810 = vpop.f32.mrf.mxu0
        %v811 = vadd.f32 0.0, %v810
        %v812 = vpop.f32.mrf.mxu0
        %v813 = vpop.f32.mrf.mxu0
        %v814 = vadd.f32 0.0, %v813
        %v815 = vpop.f32.mrf.mxu0
        %816 = vmatprep.mubr.bf16.mxu0 0
        %817 = vmatmul.mubr.bf16.gmra.mxu0 %v757
        %v818 = vpop.f32.mrf.mxu0
        %v819 = vadd.f32 0.0, %v818
        %v820 = vpop.f32.mrf.mxu0
        %v821 = vpop.f32.mrf.mxu0
        %v822 = vadd.f32 0.0, %v821
        %v823 = vpop.f32.mrf.mxu0
        %824 = vmatprep.mubr.bf16.mxu0 0
        %825 = vmatmul.mubr.bf16.gmra.mxu0 %v760
        %v826 = vpop.f32.mrf.mxu0
        %v827 = vadd.f32 0.0, %v826
        %v828 = vpop.f32.mrf.mxu0
        %v829 = vpop.f32.mrf.mxu0
        %v830 = vadd.f32 0.0, %v829
        %v831 = vpop.f32.mrf.mxu0
        %832 = vdwg.mxu0
        %v833 = vtanh.pop %v803
        %v834 = vtanh.pop %v806
        %v835 = vtanh.pop %v811
        %v836 = vtanh.pop %v814
        %v837 = vxor.u32 %v819, 2147483648
        %v838 = vxor.u32 %v822, 2147483648
        %v839 = vxor.u32 %v827, 2147483648
        %v840 = vxor.u32 %v830, 2147483648
        %v841 = vmul.f32 %v837, 1.442695
        %v842 = vpow.pop %v841
        %v843 = vmul.f32 %v838, 1.442695
        %v844 = vpow.pop %v843
        %v845 = vmul.f32 %v839, 1.442695
        %v846 = vpow.pop %v845
        %v847 = vmul.f32 %v840, 1.442695
        %v848 = vpow.pop %v847
        %v849 = vadd.f32 %v842, 1.0
        %v850 = vadd.f32 %v844, 1.0
        %v851 = vadd.f32 %v846, 1.0
        %v852 = vadd.f32 %v848, 1.0
        %v853 = vrcp.pop %v849
        %v854 = vmul.f32 1.0, %v853
        %v855 = vrcp.pop %v850
        %v856 = vmul.f32 1.0, %v855
        %v857 = vrcp.pop %v851
        %v858 = vmul.f32 1.0, %v857
        %v859 = vrcp.pop %v852
        %v860 = vmul.f32 1.0, %v859
        %v861 = vmul.f32 %v833, %v854
        %v862 = vmul.f32 %v834, %v856
        %v863 = vmul.f32 %v835, %v858
        %v864 = vmul.f32 %v836, %v860
        %v865 = vpack.c.bf16 %v862, %v861
        %v866 = vpack.c.bf16 %v864, %v863
        %s867 = scalar_lea.vmem %s266, 16
        %v868 = vld [vmem:[%s867] sm:$0xf]
        %v869 = vld [vmem:[%s867 + $0x4] sm:$0xf]
        %v870 = vld [vmem:[%s867 + $0x8] sm:$0xf]
        %v871 = vld [vmem:[%s867 + $0xc] sm:$0xf]
        %v876 = vunpack.c.l.b16 %v868
        %v877 = vunpack.c.l.b16 %v869
        %v878 = vunpack.c.l.b16 %v870
        %v879 = vunpack.c.l.b16 %v871
        %v880 = vpack.c.b16 %v877, %v876
        %v881 = vpack.c.b16 %v879, %v878
        %vm882 = vcmask 269312
        %v884 = vsel %vm882, %v880, 0
        %v887 = vsel %vm882, %v881, 0
        %889 = vmatprep.subr.bf16.mxu0 0
        %890 = vmatpush1.bf16.msra.mxu0 0
        %891 = vmatprep.subr.bf16.mxu0 0
        %892 = vmatpush1.bf16.msra.mxu0 0
        %893 = vmatprep.subr.bf16.mxu0 0
        %894 = vmatpush1.bf16.msra.mxu0 0
        %895 = vmatprep.subr.bf16.mxu0 0
        %896 = vmatpush1.bf16.msra.mxu0 0
        %897 = vmatprep.subr.bf16.mxu0 0
        %898 = vmatpush1.bf16.msra.mxu0 0
        %899 = vmatprep.subr.bf16.mxu0 0
        %900 = vmatpush1.bf16.msra.mxu0 %v766
        %901 = vmatprep.subr.bf16.mxu0 0
        %902 = vmatpush1.bf16.msra.mxu0 %v866
        %903 = vmatprep.subr.bf16.mxu0 0
        %904 = vmatpush1.bf16.msra.mxu0 %v865
        %905 = vmatprep.subr.bf16.mxu0 0
        %906 = vmatpush2.bf16.msra.mxu0 0
        %907 = vmatprep.subr.bf16.mxu0 0
        %908 = vmatpush2.bf16.msra.mxu0 0
        %909 = vmatprep.subr.bf16.mxu0 0
        %910 = vmatpush2.bf16.msra.mxu0 0
        %911 = vmatprep.subr.bf16.mxu0 0
        %912 = vmatpush2.bf16.msra.mxu0 0
        %913 = vmatprep.subr.bf16.mxu0 0
        %914 = vmatpush2.bf16.msra.mxu0 0
        %915 = vmatprep.subr.bf16.mxu0 0
        %916 = vmatpush2.bf16.msra.mxu0 0
        %917 = vmatprep.subr.bf16.mxu0 0
        %918 = vmatpush2.bf16.msra.mxu0 0
        %919 = vmatprep.subr.bf16.mxu0 0
        %920 = vmatpush2.bf16.msra.mxu0 0
        %921 = vmatprep.mubr.bf16.mxu0 0
        %922 = vmatmul.mubr.bf16.gmra.mxu0 %v884
        %v923 = vpop.f32.mrf.mxu0
        %v924 = vadd.f32 0.0, %v923
        %v925 = vpop.f32.mrf.mxu0
        %v926 = vpop.f32.mrf.mxu0
        %v927 = vadd.f32 0.0, %v926
        %v928 = vpop.f32.mrf.mxu0
        %929 = vmatprep.mubr.bf16.mxu0 0
        %930 = vmatmul.mubr.bf16.gmra.mxu0 %v887
        %v931 = vpop.f32.mrf.mxu0
        %v932 = vadd.f32 0.0, %v931
        %v933 = vpop.f32.mrf.mxu0
        %v934 = vpop.f32.mrf.mxu0
        %v935 = vadd.f32 0.0, %v934
        %v936 = vpop.f32.mrf.mxu0
        %937 = vdwg.mxu0
        %938 = vst [vmem:[#allocation2] sm:$0xff] %v924
        %939 = vst [vmem:[#allocation2 + $0x8] sm:$0xff] %v927
        %940 = vst [vmem:[#allocation2 + $0x10] sm:$0xff] %v932
        %941 = vst [vmem:[#allocation2 + $0x18] sm:$0xff] %v935
        %v942 = vld [vmem:[%s271] sm:$0xff]
        %v943 = vld [vmem:[%s271 + $0x8] sm:$0xff]
        %v944 = vld [vmem:[%s271 + $0x10] sm:$0xff]
        %v945 = vld [vmem:[%s271 + $0x18] sm:$0xff]
        %v946 = vadd.f32 %v942, %v924
        %v947 = vadd.f32 %v943, %v927
        %v948 = vadd.f32 %v944, %v932
        %v949 = vadd.f32 %v945, %v935
        %950 = vst [vmem:[%s271] sm:$0xff] %v946
        %951 = vst [vmem:[%s271 + $0x8] sm:$0xff] %v947
        %952 = vst [vmem:[%s271 + $0x10] sm:$0xff] %v948
        %953 = vst [vmem:[%s271 + $0x18] sm:$0xff] %v949
      $region48: #{_lambda_.1} parent=39 // pred_fallthru
        _
      %p954 = scmp.gt.s32.totalorder %s276, 2
      // Predicated region
      $region49: #{_lambda_.1} parent=39 // pred_check
        %p955 = pneg %p954
      $region50: #{_lambda_.1} parent=39 // pred_check_branch
        %957 = sbr.rel (%p955) target = $region52
      $region51: #{_lambda_.1} parent=39 // pred_region
        %v958 = vld [vmem:[#allocation2] sm:$0xff]
        %v959 = vld [vmem:[#allocation2 + $0x8] sm:$0xff]
        %v960 = vld [vmem:[#allocation2 + $0x10] sm:$0xff]
        %v961 = vld [vmem:[#allocation2 + $0x18] sm:$0xff]
        %v962 = vpack.c.bf16 %v959, %v958
        %v963 = vpack.c.bf16 %v961, %v960
        %966 = vrot.lane.b32.xlu0 %v962, 4
        %v967 = vpop.permute.xlu0 %966
        %968 = vrot.lane.b32.xlu0 %v963, 4
        %v969 = vpop.permute.xlu0 %968
        %v974 = vld [vmem:[%s5] sm:$0x1]
        %vm975 = vcmp.ne.f32.partialorder %v974, 0.0
        %v976 = vsel %vm975, 1, 0
        %v977 = vlaneseq
        %v978 = vshrl.u32 %v977, 7
        %v979 = vsub.s32 0, %v978
        %v980 = vrot.slane %v976, %v979
        %vm981 = vcmp.eq.s32.totalorder %v980, 1
        %vm982 = vmpackc.low %vm981, %vm981
        %v983 = vsel %vm982, 65537, 0
        %v984 = vlaneseq
        %v985 = vshrl.u32 %v984, 7
        %v986 = vsub.s32 0, %v985
        %v987 = vrot.slane %v983, %v986
        %vm988 = vcmp.ne.s16.totalorder %v987, 0
        %v989 = vsel %vm988, %v967, 0
        %v990 = vsel %vm988, %v969, 0
        %991 = vrot.lane.b32.xlu0 %v962, 124
        %v992 = vpop.permute.xlu0 %991
        %993 = vrot.lane.b32.xlu0 %v963, 124
        %v994 = vpop.permute.xlu0 %993
        %s999 = scalar_lea.vmem %s5, 5
        %v1000 = vld [vmem:[%s999] sm:$0x1]
        %vm1001 = vcmp.ne.f32.partialorder %v1000, 0.0
        %v1002 = vsel %vm1001, 1, 0
        %v1003 = vlaneseq
        %v1004 = vshrl.u32 %v1003, 7
        %v1005 = vsub.s32 0, %v1004
        %v1006 = vrot.slane %v1002, %v1005
        %vm1007 = vcmp.eq.s32.totalorder %v1006, 1
        %vm1008 = vmpackc.low %vm1007, %vm1007
        %v1009 = vsel %vm1008, 65537, 0
        %v1010 = vlaneseq
        %v1011 = vshrl.u32 %v1010, 7
        %v1012 = vsub.s32 0, %v1011
        %v1013 = vrot.slane %v1009, %v1012
        %vm1014 = vcmp.ne.s16.totalorder %v1013, 0
        %v1015 = vsel %vm1014, %v992, 0
        %v1016 = vsel %vm1014, %v994, 0
        %s1017 = scalar_lea.vmem %s261, 64
        %v1018 = vld [vmem:[%s1017] sm:$0xf]
        %v1019 = vld [vmem:[%s1017 + $0x4] sm:$0xf]
        %v1020 = vld [vmem:[%s1017 + $0x8] sm:$0xf]
        %v1021 = vld [vmem:[%s1017 + $0xc] sm:$0xf]
        %v1022 = vld [vmem:[%s1017 + $0x10] sm:$0xf]
        %v1023 = vld [vmem:[%s1017 + $0x14] sm:$0xf]
        %v1024 = vld [vmem:[%s1017 + $0x18] sm:$0xf]
        %v1025 = vld [vmem:[%s1017 + $0x1c] sm:$0xf]
        %v1034 = vunpack.c.l.b16 %v1018
        %v1035 = vunpack.c.l.b16 %v1019
        %v1036 = vunpack.c.l.b16 %v1020
        %v1037 = vunpack.c.l.b16 %v1021
        %v1038 = vunpack.c.l.b16 %v1022
        %v1039 = vunpack.c.l.b16 %v1023
        %v1040 = vunpack.c.l.b16 %v1024
        %v1041 = vunpack.c.l.b16 %v1025
        %v1042 = vpack.c.b16 %v1035, %v1034
        %v1043 = vpack.c.b16 %v1037, %v1036
        %v1044 = vpack.c.b16 %v1039, %v1038
        %v1045 = vpack.c.b16 %v1041, %v1040
        %vm1046 = vcmask 793600
        %v1048 = vsel %vm1046, %v1042, 0
        %v1051 = vsel %vm1046, %v1043, 0
        %v1054 = vsel %vm1046, %v1044, 0
        %v1057 = vsel %vm1046, %v1045, 0
        %vm1059 = vcmask 1040384
        %v1060 = vsel 0, 4294967295, 65535
        %v1061 = vsel %vm1059, %v1060, 0
        %v1063 = vand.u32 1065369472, %v1061
        %1065 = vmatprep.subr.bf16.mxu0 0
        %1066 = vmatpush1.bf16.msra.mxu0 0
        %1067 = vmatprep.subr.bf16.mxu0 0
        %1068 = vmatpush1.bf16.msra.mxu0 %v1063
        %1069 = vmatprep.subr.bf16.mxu0 0
        %1070 = vmatpush1.bf16.msra.mxu0 %v1016
        %1071 = vmatprep.subr.bf16.mxu0 0
        %1072 = vmatpush1.bf16.msra.mxu0 %v1015
        %1073 = vmatprep.subr.bf16.mxu0 0
        %1074 = vmatpush1.bf16.msra.mxu0 %v963
        %1075 = vmatprep.subr.bf16.mxu0 0
        %1076 = vmatpush1.bf16.msra.mxu0 %v962
        %1077 = vmatprep.subr.bf16.mxu0 0
        %1078 = vmatpush1.bf16.msra.mxu0 %v990
        %1079 = vmatprep.subr.bf16.mxu0 0
        %1080 = vmatpush1.bf16.msra.mxu0 %v989
        %1081 = vmatprep.subr.bf16.mxu0 0
        %1082 = vmatpush2.bf16.msra.mxu0 0
        %1083 = vmatprep.subr.bf16.mxu0 0
        %1084 = vmatpush2.bf16.msra.mxu0 0
        %1085 = vmatprep.subr.bf16.mxu0 0
        %1086 = vmatpush2.bf16.msra.mxu0 0
        %1087 = vmatprep.subr.bf16.mxu0 0
        %1088 = vmatpush2.bf16.msra.mxu0 0
        %1089 = vmatprep.subr.bf16.mxu0 0
        %1090 = vmatpush2.bf16.msra.mxu0 0
        %1091 = vmatprep.subr.bf16.mxu0 0
        %1092 = vmatpush2.bf16.msra.mxu0 0
        %1093 = vmatprep.subr.bf16.mxu0 0
        %1094 = vmatpush2.bf16.msra.mxu0 0
        %1095 = vmatprep.subr.bf16.mxu0 0
        %1096 = vmatpush2.bf16.msra.mxu0 0
        %1097 = vmatprep.mubr.bf16.mxu0 0
        %1098 = vmatmul.mubr.bf16.gmra.mxu0 %v1048
        %v1099 = vpop.f32.mrf.mxu0
        %v1100 = vadd.f32 0.0, %v1099
        %v1101 = vpop.f32.mrf.mxu0
        %v1102 = vpop.f32.mrf.mxu0
        %v1103 = vadd.f32 0.0, %v1102
        %v1104 = vpop.f32.mrf.mxu0
        %1105 = vmatprep.mubr.bf16.mxu0 0
        %1106 = vmatmul.mubr.bf16.gmra.mxu0 %v1051
        %v1107 = vpop.f32.mrf.mxu0
        %v1108 = vadd.f32 0.0, %v1107
        %v1109 = vpop.f32.mrf.mxu0
        %v1110 = vpop.f32.mrf.mxu0
        %v1111 = vadd.f32 0.0, %v1110
        %v1112 = vpop.f32.mrf.mxu0
        %1113 = vmatprep.mubr.bf16.mxu0 0
        %1114 = vmatmul.mubr.bf16.gmra.mxu0 %v1054
        %v1115 = vpop.f32.mrf.mxu0
        %v1116 = vadd.f32 0.0, %v1115
        %v1117 = vpop.f32.mrf.mxu0
        %v1118 = vpop.f32.mrf.mxu0
        %v1119 = vadd.f32 0.0, %v1118
        %v1120 = vpop.f32.mrf.mxu0
        %1121 = vmatprep.mubr.bf16.mxu0 0
        %1122 = vmatmul.mubr.bf16.gmra.mxu0 %v1057
        %v1123 = vpop.f32.mrf.mxu0
        %v1124 = vadd.f32 0.0, %v1123
        %v1125 = vpop.f32.mrf.mxu0
        %v1126 = vpop.f32.mrf.mxu0
        %v1127 = vadd.f32 0.0, %v1126
        %v1128 = vpop.f32.mrf.mxu0
        %1129 = vdwg.mxu0
        %v1130 = vtanh.pop %v1100
        %v1131 = vtanh.pop %v1103
        %v1132 = vtanh.pop %v1108
        %v1133 = vtanh.pop %v1111
        %v1134 = vxor.u32 %v1116, 2147483648
        %v1135 = vxor.u32 %v1119, 2147483648
        %v1136 = vxor.u32 %v1124, 2147483648
        %v1137 = vxor.u32 %v1127, 2147483648
        %v1138 = vmul.f32 %v1134, 1.442695
        %v1139 = vpow.pop %v1138
        %v1140 = vmul.f32 %v1135, 1.442695
        %v1141 = vpow.pop %v1140
        %v1142 = vmul.f32 %v1136, 1.442695
        %v1143 = vpow.pop %v1142
        %v1144 = vmul.f32 %v1137, 1.442695
        %v1145 = vpow.pop %v1144
        %v1146 = vadd.f32 %v1139, 1.0
        %v1147 = vadd.f32 %v1141, 1.0
        %v1148 = vadd.f32 %v1143, 1.0
        %v1149 = vadd.f32 %v1145, 1.0
        %v1150 = vrcp.pop %v1146
        %v1151 = vmul.f32 1.0, %v1150
        %v1152 = vrcp.pop %v1147
        %v1153 = vmul.f32 1.0, %v1152
        %v1154 = vrcp.pop %v1148
        %v1155 = vmul.f32 1.0, %v1154
        %v1156 = vrcp.pop %v1149
        %v1157 = vmul.f32 1.0, %v1156
        %v1158 = vmul.f32 %v1130, %v1151
        %v1159 = vmul.f32 %v1131, %v1153
        %v1160 = vmul.f32 %v1132, %v1155
        %v1161 = vmul.f32 %v1133, %v1157
        %v1162 = vpack.c.bf16 %v1159, %v1158
        %v1163 = vpack.c.bf16 %v1161, %v1160
        %s1164 = scalar_lea.vmem %s266, 32
        %v1165 = vld [vmem:[%s1164] sm:$0xf]
        %v1166 = vld [vmem:[%s1164 + $0x4] sm:$0xf]
        %v1167 = vld [vmem:[%s1164 + $0x8] sm:$0xf]
        %v1168 = vld [vmem:[%s1164 + $0xc] sm:$0xf]
        %v1173 = vunpack.c.l.b16 %v1165
        %v1174 = vunpack.c.l.b16 %v1166
        %v1175 = vunpack.c.l.b16 %v1167
        %v1176 = vunpack.c.l.b16 %v1168
        %v1177 = vpack.c.b16 %v1174, %v1173
        %v1178 = vpack.c.b16 %v1176, %v1175
        %vm1179 = vcmask 269312
        %v1181 = vsel %vm1179, %v1177, 0
        %v1184 = vsel %vm1179, %v1178, 0
        %1186 = vmatprep.subr.bf16.mxu0 0
        %1187 = vmatpush1.bf16.msra.mxu0 0
        %1188 = vmatprep.subr.bf16.mxu0 0
        %1189 = vmatpush1.bf16.msra.mxu0 0
        %1190 = vmatprep.subr.bf16.mxu0 0
        %1191 = vmatpush1.bf16.msra.mxu0 0
        %1192 = vmatprep.subr.bf16.mxu0 0
        %1193 = vmatpush1.bf16.msra.mxu0 0
        %1194 = vmatprep.subr.bf16.mxu0 0
        %1195 = vmatpush1.bf16.msra.mxu0 0
        %1196 = vmatprep.subr.bf16.mxu0 0
        %1197 = vmatpush1.bf16.msra.mxu0 %v1063
        %1198 = vmatprep.subr.bf16.mxu0 0
        %1199 = vmatpush1.bf16.msra.mxu0 %v1163
        %1200 = vmatprep.subr.bf16.mxu0 0
        %1201 = vmatpush1.bf16.msra.mxu0 %v1162
        %1202 = vmatprep.subr.bf16.mxu0 0
        %1203 = vmatpush2.bf16.msra.mxu0 0
        %1204 = vmatprep.subr.bf16.mxu0 0
        %1205 = vmatpush2.bf16.msra.mxu0 0
        %1206 = vmatprep.subr.bf16.mxu0 0
        %1207 = vmatpush2.bf16.msra.mxu0 0
        %1208 = vmatprep.subr.bf16.mxu0 0
        %1209 = vmatpush2.bf16.msra.mxu0 0
        %1210 = vmatprep.subr.bf16.mxu0 0
        %1211 = vmatpush2.bf16.msra.mxu0 0
        %1212 = vmatprep.subr.bf16.mxu0 0
        %1213 = vmatpush2.bf16.msra.mxu0 0
        %1214 = vmatprep.subr.bf16.mxu0 0
        %1215 = vmatpush2.bf16.msra.mxu0 0
        %1216 = vmatprep.subr.bf16.mxu0 0
        %1217 = vmatpush2.bf16.msra.mxu0 0
        %1218 = vmatprep.mubr.bf16.mxu0 0
        %1219 = vmatmul.mubr.bf16.gmra.mxu0 %v1181
        %v1220 = vpop.f32.mrf.mxu0
        %v1221 = vadd.f32 0.0, %v1220
        %v1222 = vpop.f32.mrf.mxu0
        %v1223 = vpop.f32.mrf.mxu0
        %v1224 = vadd.f32 0.0, %v1223
        %v1225 = vpop.f32.mrf.mxu0
        %1226 = vmatprep.mubr.bf16.mxu0 0
        %1227 = vmatmul.mubr.bf16.gmra.mxu0 %v1184
        %v1228 = vpop.f32.mrf.mxu0
        %v1229 = vadd.f32 0.0, %v1228
        %v1230 = vpop.f32.mrf.mxu0
        %v1231 = vpop.f32.mrf.mxu0
        %v1232 = vadd.f32 0.0, %v1231
        %v1233 = vpop.f32.mrf.mxu0
        %1234 = vdwg.mxu0
        %1235 = vst [vmem:[#allocation2] sm:$0xff] %v1221
        %1236 = vst [vmem:[#allocation2 + $0x8] sm:$0xff] %v1224
        %1237 = vst [vmem:[#allocation2 + $0x10] sm:$0xff] %v1229
        %1238 = vst [vmem:[#allocation2 + $0x18] sm:$0xff] %v1232
        %v1239 = vld [vmem:[%s271] sm:$0xff]
        %v1240 = vld [vmem:[%s271 + $0x8] sm:$0xff]
        %v1241 = vld [vmem:[%s271 + $0x10] sm:$0xff]
        %v1242 = vld [vmem:[%s271 + $0x18] sm:$0xff]
        %v1243 = vadd.f32 %v1239, %v1221
        %v1244 = vadd.f32 %v1240, %v1224
        %v1245 = vadd.f32 %v1241, %v1229
        %v1246 = vadd.f32 %v1242, %v1232
        %1247 = vst [vmem:[%s271] sm:$0xff] %v1243
        %1248 = vst [vmem:[%s271 + $0x8] sm:$0xff] %v1244
        %1249 = vst [vmem:[%s271 + $0x10] sm:$0xff] %v1245
        %1250 = vst [vmem:[%s271 + $0x18] sm:$0xff] %v1246
      $region52: #{_lambda_.1} parent=39 // pred_fallthru
        _
      %p1251 = scmp.lt.s32.totalorder %s23, 2
      %s1252 = scalar_select %p1251, %s23, 2
      %s1253 = smul.addr %s1252, 4
      %s1254 = smul.addr %s1253, 8
      %s1255 = scalar_lea.vmem %s6, %s1254
      // Predicated region
      $region53: #{_lambda_.1} parent=39 // pred_check
        %p1256 = pneg %p161
      $region54: #{_lambda_.1} parent=39 // pred_check_branch
        %1258 = sbr.rel (%p1256) target = $region56
      $region55: #{_lambda_.1} parent=39 // pred_region
        _
      $region56: #{_lambda_.1} parent=39 // pred_fallthru
        _
    $region40: #{_lambda_.1} parent=5 // pred_fallthru
      _
    %p1259 = scmp.le.s32.totalorder 2, %s18
    // Predicated region
    $region57: #{_lambda_.1} parent=5 // pred_check
      %p1260 = pneg %p1259
    $region58: #{_lambda_.1} parent=5 // pred_check_branch
      %1262 = sbr.rel (%p1260) target = $region60
    $region59: #{_lambda_.1} parent=5 // pred_region
      %s1263 = ssub.s32 %s18, 2
      // Predicated region
      $region61: #{_lambda_.1} parent=59 // pred_check
        %p1264 = pneg %p167
      $region62: #{_lambda_.1} parent=59 // pred_check_branch
        %1266 = sbr.rel (%p1264) target = $region64
      $region63: #{_lambda_.1} parent=59 // pred_region
        %p1267 = scmp.lt.s32.totalorder %s24, 2
        %s1268 = scalar_select %p1267, %s24, 2
        %s1269 = smul.addr %s1268, 4
        %s1270 = smul.addr %s1269, 8
        %s1271 = scalar_lea.vmem %s6, %s1270
      $region64: #{_lambda_.1} parent=59 // pred_fallthru
        _
    $region60: #{_lambda_.1} parent=5 // pred_fallthru
      _
  $region6: #{_lambda_.1} parent=0 // loop_footer
    %s22 = sadd.s32 1, %s18
  $region7: #{_lambda_.1} parent=0 // loop_footer_branch
    %17 = sbr.rel target = $region3
  $region8: #{_lambda_.1} parent=0 // loop_exit
    _

</llo_original>
